<compile_context>
chip_gen: v5e
topology: v5e:2x2
jax: 0.10.0
libtpu: 0.0.40
codegen_flags: <defaults>
</compile_context>

<pallas_src>
import jax
import jax.numpy as jnp
from jax.experimental import pallas as pl
from jax.experimental.pallas import tpu as pltpu


def _adjust_kernel(x_ref, w_ref, scale_ref, shift_ref, o_ref):
    """One (TILE_M, Cin) row-slab of 1x1 conv + folded BatchNorm.

    x_ref:     (TILE_M, Cin)   channels-last activations (lanes = Cin)
    w_ref:     (Cin, Cout)     1x1 conv weight (contraction dim on sublanes)
    scale_ref: (1, Cout)       BN scale = gamma / sqrt(var + eps)
    shift_ref: (1, Cout)       BN shift = beta - mean * scale
    o_ref:     (TILE_M, Cout)  lane-dense output slab
    """
    acc = jnp.dot(x_ref[...], w_ref[...],
                  preferred_element_type=jnp.float32,
                  precision=jax.lax.Precision.HIGHEST)
    # Fused BN epilogue: one FMA per output element (VALU slot, free under MXU).
    o_ref[...] = (acc * scale_ref[...] + shift_ref[...]).astype(o_ref.dtype)


def adjust_layer(x, conv_w, bn_gamma, bn_beta, bn_mean, bn_var, *,
                 eps=1e-5, crop=False, tile_m=256):
    """Pallas implementation of AdjustLayer.forward (inference BatchNorm).

    x:      (B, Cin, H, W)       NCHW input
    conv_w: (Cout, Cin, 1, 1)    1x1 conv weight, no bias
    bn_*:   (Cout,)              BatchNorm2d gamma / beta / running stats
    Returns x_ori (B, Cout, H, W), or (x_ori, xf) when crop=True.
    """
    B, Cin, H, W = x.shape
    Cout = conv_w.shape[0]

    # Fold BatchNorm into a per-output-channel affine (tiny glue, outside kernel).
    scale_v = (bn_gamma.astype(jnp.float32)
               / jnp.sqrt(bn_var.astype(jnp.float32) + eps))            # (Cout,)
    shift_v = bn_beta.astype(jnp.float32) - bn_mean.astype(jnp.float32) * scale_v
    scale = scale_v.reshape(1, Cout)
    shift = shift_v.reshape(1, Cout)

    # 1x1 conv weight as a (Cin, Cout) matmul operand.
    w2 = jnp.transpose(conv_w.reshape(Cout, Cin), (1, 0)).astype(x.dtype)

    # Channels-last, rows = spatial positions (lane axis = channels).
    M = B * H * W
    xm = jnp.transpose(x, (0, 2, 3, 1)).reshape(M, Cin)

    # Pick an effective row tile: big enough to amortize per-step overhead,
    # small enough not to pad tiny problems; always a multiple of 8 sublanes.
    m8 = pl.cdiv(M, 8) * 8
    tile_m_eff = min(tile_m, m8)
    Mp = pl.cdiv(M, tile_m_eff) * tile_m_eff
    if Mp != M:
        xm = jnp.pad(xm, ((0, Mp - M), (0, 0)))

    grid_m = Mp // tile_m_eff

    out = pl.pallas_call(
        _adjust_kernel,
        out_shape=jax.ShapeDtypeStruct((Mp, Cout), x.dtype),
        grid_spec=pltpu.PrefetchScalarGridSpec(
            num_scalar_prefetch=0,
            grid=(grid_m,),
            in_specs=[
                pl.BlockSpec((tile_m_eff, Cin), lambda i: (i, 0)),
                pl.BlockSpec((Cin, Cout), lambda i: (0, 0)),
                pl.BlockSpec((1, Cout), lambda i: (0, 0)),
                pl.BlockSpec((1, Cout), lambda i: (0, 0)),
            ],
            out_specs=pl.BlockSpec((tile_m_eff, Cout), lambda i: (i, 0)),
        ),
        compiler_params=pltpu.CompilerParams(
            dimension_semantics=("parallel",)),
    )(xm, w2, scale, shift)

    x_ori = out[:M].reshape(B, H, W, Cout).transpose(0, 3, 1, 2)

    if not crop:
        return x_ori
    # Crop branch: PyTorch only defines xf when spatial < 20 (else it would
    # raise); mirror the usable semantics and fall back to x_ori otherwise.
    xf = x_ori[:, :, 4:-4, 4:-4] if x_ori.shape[3] < 20 else x_ori
    return (x_ori, xf)


# ---------------- pure-JAX reference (for self-check) ----------------
def _adjust_ref(x, conv_w, bn_gamma, bn_beta, bn_mean, bn_var, *,
                eps=1e-5, crop=False):
    y = jax.lax.conv_general_dilated(
        x.astype(jnp.float32), conv_w.astype(jnp.float32),
        window_strides=(1, 1), padding="VALID",
        dimension_numbers=("NCHW", "OIHW", "NCHW"),
        precision=jax.lax.Precision.HIGHEST)
    inv = bn_gamma / jnp.sqrt(bn_var + eps)
    y = y * inv[None, :, None, None] + (bn_beta - bn_mean * inv)[None, :, None, None]
    if not crop:
        return y
    xf = y[:, :, 4:-4, 4:-4] if y.shape[3] < 20 else y
    return (y, xf)


if __name__ == "__main__":
    key = jax.random.PRNGKey(0)
    B, Cin, Cout = 2, 32, 128
    H = W = 16

    k = jax.random.split(key, 6)
    x = jax.random.normal(k[0], (B, Cin, H, W), dtype=jnp.float32)
    conv_w = jax.random.normal(k[1], (Cout, Cin, 1, 1), dtype=jnp.float32) * 0.1
    bn_gamma = jax.random.uniform(k[2], (Cout,), minval=0.5, maxval=1.5)
    bn_beta = jax.random.normal(k[3], (Cout,), dtype=jnp.float32) * 0.1
    bn_mean = jax.random.normal(k[4], (Cout,), dtype=jnp.float32) * 0.1
    bn_var = jax.random.uniform(k[5], (Cout,), minval=0.5, maxval=1.5)

    # crop=False path (default forward)
    out = adjust_layer(x, conv_w, bn_gamma, bn_beta, bn_mean, bn_var, crop=False)
    out = jax.block_until_ready(out)
    ref = jax.block_until_ready(
        _adjust_ref(x, conv_w, bn_gamma, bn_beta, bn_mean, bn_var, crop=False))
    assert out.shape == (B, Cout, H, W), out.shape
    assert jnp.allclose(out, ref, atol=1e-3, rtol=1e-3), "mismatch (crop=False)"

    # crop=True path (spatial 16 < 20 -> center crop 4:-4)
    out2, xf2 = adjust_layer(x, conv_w, bn_gamma, bn_beta, bn_mean, bn_var, crop=True)
    out2 = jax.block_until_ready(out2)
    xf2 = jax.block_until_ready(xf2)
    ref2, reff = _adjust_ref(x, conv_w, bn_gamma, bn_beta, bn_mean, bn_var, crop=True)
    assert xf2.shape == (B, Cout, H - 8, W - 8), xf2.shape
    assert jnp.allclose(out2, ref2, atol=1e-3, rtol=1e-3), "mismatch (crop=True, x_ori)"
    assert jnp.allclose(xf2, reff, atol=1e-3, rtol=1e-3), "mismatch (crop=True, xf)"

    print("KERNEL_OK")
</pallas_src>

<mosaic_0001>
module attributes {stable_mosaic.version = 11 : i64} {
  func.func @_adjust_kernel(%arg0: i32, %arg1: memref<256x32xf32, #tpu.memory_space<vmem>>, %arg2: memref<32x128xf32, #tpu.memory_space<vmem>>, %arg3: memref<1x128xf32, #tpu.memory_space<vmem>>, %arg4: memref<1x128xf32, #tpu.memory_space<vmem>>, %arg5: memref<256x128xf32, #tpu.memory_space<vmem>>) attributes {dimension_semantics = [#tpu.dimension_semantics<parallel>], iteration_bounds = array<i64: 2>, scalar_prefetch = 0 : i64, scratch_operands = 0 : i64, tpu.core_type = #tpu.core_type<tc>, window_params = [{transform_indices = @transform_0, window_bounds = array<i64: 256, 32>}, {pipeline_mode = #tpu.pipeline_mode<synchronous>, transform_indices = @transform_1, window_bounds = array<i64: 32, 128>}, {pipeline_mode = #tpu.pipeline_mode<synchronous>, transform_indices = @transform_2, window_bounds = array<i64: 1, 128>}, {pipeline_mode = #tpu.pipeline_mode<synchronous>, transform_indices = @transform_3, window_bounds = array<i64: 1, 128>}, {transform_indices = @transform_4, window_bounds = array<i64: 256, 128>}]} {
    %c0 = arith.constant 0 : index
    %c0_0 = arith.constant 0 : index
    %0 = vector.load %arg1[%c0, %c0_0] : memref<256x32xf32, #tpu.memory_space<vmem>>, vector<256x32xf32>
    %c0_1 = arith.constant 0 : index
    %c0_2 = arith.constant 0 : index
    %1 = vector.load %arg2[%c0_1, %c0_2] : memref<32x128xf32, #tpu.memory_space<vmem>>, vector<32x128xf32>
    %cst = arith.constant dense<0.000000e+00> : vector<256x128xf32>
    %2 = tpu.matmul %0, %1, %cst {dimension_numbers = #tpu.dot_dimension_numbers<[1], [0], [0], [1], [0, 0, 1, 1], [], []>, precision = #tpu.contract_precision<fp32>} : vector<256x32xf32>, vector<32x128xf32>, vector<256x128xf32> -> vector<256x128xf32>
    %c0_3 = arith.constant 0 : index
    %c0_4 = arith.constant 0 : index
    %3 = vector.load %arg3[%c0_3, %c0_4] : memref<1x128xf32, #tpu.memory_space<vmem>>, vector<1x128xf32>
    %4 = vector.broadcast %3 : vector<1x128xf32> to vector<256x128xf32>
    %5 = arith.mulf %2, %4 : vector<256x128xf32>
    %c0_5 = arith.constant 0 : index
    %c0_6 = arith.constant 0 : index
    %6 = vector.load %arg4[%c0_5, %c0_6] : memref<1x128xf32, #tpu.memory_space<vmem>>, vector<1x128xf32>
    %7 = vector.broadcast %6 : vector<1x128xf32> to vector<256x128xf32>
    %8 = arith.addf %5, %7 : vector<256x128xf32>
    %c0_7 = arith.constant 0 : index
    %c0_8 = arith.constant 0 : index
    %9 = vector.load %arg5[%c0_7, %c0_8] : memref<256x128xf32, #tpu.memory_space<vmem>>, vector<256x128xf32>
    tpu.vector_store %arg5[%c0_7, %c0_8], %8 {strides = array<i32>} : memref<256x128xf32, #tpu.memory_space<vmem>>, vector<256x128xf32>,
    return
  }
  func.func @transform_0(%arg0: i32) -> (i32, i32) {
    %c0_i32 = arith.constant 0 : i32
    %c0_i32_0 = arith.constant 0 : i32
    return %arg0, %c0_i32 : i32, i32
  }
  func.func @transform_1(%arg0: i32) -> (i32, i32) {
    %c0_i32 = arith.constant 0 : i32
    %c0_i32_0 = arith.constant 0 : i32
    %c0_i32_1 = arith.constant 0 : i32
    return %c0_i32, %c0_i32_0 : i32, i32
  }
  func.func @transform_2(%arg0: i32) -> (i32, i32) {
    %c0_i32 = arith.constant 0 : i32
    %c0_i32_0 = arith.constant 0 : i32
    %c0_i32_1 = arith.constant 0 : i32
    return %c0_i32, %c0_i32_0 : i32, i32
  }
  func.func @transform_3(%arg0: i32) -> (i32, i32) {
    %c0_i32 = arith.constant 0 : i32
    %c0_i32_0 = arith.constant 0 : i32
    %c0_i32_1 = arith.constant 0 : i32
    return %c0_i32, %c0_i32_0 : i32, i32
  }
  func.func @transform_4(%arg0: i32) -> (i32, i32) {
    %c0_i32 = arith.constant 0 : i32
    %c0_i32_0 = arith.constant 0 : i32
    return %arg0, %c0_i32 : i32, i32
  }
}

</mosaic_0001>

<llo_original>
// kernel: tpu_custom_call.1
$region0: #{tpu_custom_call.1}
  #allocation0 [shape = 'u32[]', space=smem, size = 0x4, offset = 0x4, fixed_abs, tag = 'smem constant byte address 0x4 - core index']
  #allocation1 [shape = 'u32[72,128]{1,0:T(1,128)}', space=vmem, size = 0x9000, scoped, tag = 'internal scratch']
  %s0 = inlined_call_operand.vmem [shape: f32[512,32], index: 0, kind: input, shape index: {}]
  %s1 = inlined_call_operand.vmem [shape: f32[32,128], index: 1, kind: input, shape index: {}]
  %s2 = inlined_call_operand.vmem [shape: f32[1,128], index: 2, kind: input, shape index: {}]
  %s3 = inlined_call_operand.vmem [shape: f32[1,128], index: 3, kind: input, shape index: {}]
  %s4 = inlined_call_operand.hbm [shape: f32[512,128], index: 4, kind: output, shape index: {}]
  %s5 = sld [smem:[#allocation0]]
  $region49: #{tpu_custom_call.1} parent=0
    _
  %s7 = ssub.s32 1, %s5
  %s8 = scalar_select 0, %s7, %s5
  $region1: #{tpu_custom_call.1} parent=0
    #allocation2 [shape = 'u8[262144]{0}', space=vmem, size = 0x40000, scoped, tag = 'output window, operand 0']
    #allocation3 [shape = 's32[2]{0}', space=sflag, size = 0x8, scoped, tag = 'scoped memory for tpu_custom_call.1']
    %9 = vsyncpa [#allocation3], 0
    %s10 = scalar_lea.sflag [#allocation3], 1
    %11 = vsyncpa %s10, 0
    loop: start=0, step=1, limit=4
    $region2: #{tpu_custom_call.1} parent=1 // loop_pre_header
      _
    $region3: #{tpu_custom_call.1} parent=1 // loop_header
      %s13 = sphi 0, %s17
      %p14 = scmp.ge.s32.totalorder %s13, 4
      %s23 = sphi 0, %s25
      %s26 = sphi 0, %s23
      %s27 = sphi 0, %s26
      %s43 = sphi 0, %s27
      %s47 = sphi 0, %s47
      %s49 = sphi 0, %s47
      %s50 = sphi 0, %s49
      %s64 = sphi 0, %s50
      %s68 = sphi 0, %s68
      %s70 = sphi 0, %s68
      %s71 = sphi 0, %s70
      %s85 = sphi 0, %s71
      %s89 = sphi 0, %s89
      %s91 = sphi 0, %s89
      %s92 = sphi 0, %s91
      %s106 = sphi 0, %s92
      %s112 = sphi 0, %s114
      %s115 = sphi 0, %s112
      %s116 = sphi 0, %s115
      %s132 = sphi 0, %s116
    $region4: #{tpu_custom_call.1} parent=1 // loop_header_branch
      %16 = sbr.rel (%p14) target = $region8
    $region5: #{tpu_custom_call.1} parent=1 // loop_body
      %s18 = ssub.s32 %s13, 1
      %s19 = ssub.s32 %s13, 2
      %s20 = sadd.s32 %s13, 1
      %s21 = ssub.s32 %s13, %s20
      %p22 = scmp.eq.s32.totalorder %s21, 0
      %s24 = sadd.s32 %s23, 1
      %s25 = scalar_select %p22, %s23, %s24
      %p28 = pneg %p22
      %p29 = scmp.eq.s32.totalorder %s13, 1
      %p30 = por %p28, %p29
      %p31 = scmp.ne.s32.totalorder %s23, %s26
      %p32 = scmp.eq.s32.totalorder %s13, 0
      %p33 = por %p31, %p32
      %p34 = scmp.ne.s32.totalorder %s23, %s26
      %p35 = scmp.eq.s32.totalorder %s18, 1
      %p36 = por %p34, %p35
      %p37 = scmp.ne.s32.totalorder %s26, %s27
      %p38 = scmp.eq.s32.totalorder %s18, 0
      %p39 = por %p37, %p38
      %p40 = scmp.ne.s32.totalorder %s26, %s27
      %p41 = scmp.eq.s32.totalorder %s19, 1
      %p42 = por %p40, %p41
      %p44 = scmp.ne.s32.totalorder %s27, %s43
      %p45 = scmp.eq.s32.totalorder %s19, 0
      %p46 = por %p44, %p45
      %s48 = sadd.s32 %s47, 1
      %p51 = scmp.eq.s32.totalorder %s13, 1
      %p52 = scmp.ne.s32.totalorder %s47, %s49
      %p53 = scmp.eq.s32.totalorder %s13, 0
      %p54 = por %p52, %p53
      %p55 = scmp.ne.s32.totalorder %s47, %s49
      %p56 = scmp.eq.s32.totalorder %s18, 1
      %p57 = por %p55, %p56
      %p58 = scmp.ne.s32.totalorder %s49, %s50
      %p59 = scmp.eq.s32.totalorder %s18, 0
      %p60 = por %p58, %p59
      %p61 = scmp.ne.s32.totalorder %s49, %s50
      %p62 = scmp.eq.s32.totalorder %s19, 1
      %p63 = por %p61, %p62
      %p65 = scmp.ne.s32.totalorder %s50, %s64
      %p66 = scmp.eq.s32.totalorder %s19, 0
      %p67 = por %p65, %p66
      %s69 = sadd.s32 %s68, 1
      %p72 = scmp.eq.s32.totalorder %s13, 1
      %p73 = scmp.ne.s32.totalorder %s68, %s70
      %p74 = scmp.eq.s32.totalorder %s13, 0
      %p75 = por %p73, %p74
      %p76 = scmp.ne.s32.totalorder %s68, %s70
      %p77 = scmp.eq.s32.totalorder %s18, 1
      %p78 = por %p76, %p77
      %p79 = scmp.ne.s32.totalorder %s70, %s71
      %p80 = scmp.eq.s32.totalorder %s18, 0
      %p81 = por %p79, %p80
      %p82 = scmp.ne.s32.totalorder %s70, %s71
      %p83 = scmp.eq.s32.totalorder %s19, 1
      %p84 = por %p82, %p83
      %p86 = scmp.ne.s32.totalorder %s71, %s85
      %p87 = scmp.eq.s32.totalorder %s19, 0
      %p88 = por %p86, %p87
      %s90 = sadd.s32 %s89, 1
      %p93 = scmp.eq.s32.totalorder %s13, 1
      %p94 = scmp.ne.s32.totalorder %s89, %s91
      %p95 = scmp.eq.s32.totalorder %s13, 0
      %p96 = por %p94, %p95
      %p97 = scmp.ne.s32.totalorder %s89, %s91
      %p98 = scmp.eq.s32.totalorder %s18, 1
      %p99 = por %p97, %p98
      %p100 = scmp.ne.s32.totalorder %s91, %s92
      %p101 = scmp.eq.s32.totalorder %s18, 0
      %p102 = por %p100, %p101
      %p103 = scmp.ne.s32.totalorder %s91, %s92
      %p104 = scmp.eq.s32.totalorder %s19, 1
      %p105 = por %p103, %p104
      %p107 = scmp.ne.s32.totalorder %s92, %s106
      %p108 = scmp.eq.s32.totalorder %s19, 0
      %p109 = por %p107, %p108
      %s110 = ssub.s32 %s13, %s20
      %p111 = scmp.eq.s32.totalorder %s110, 0
      %s113 = sadd.s32 %s112, 1
      %s114 = scalar_select %p111, %s112, %s113
      %p117 = pneg %p111
      %p118 = scmp.eq.s32.totalorder %s13, 1
      %p119 = por %p117, %p118
      %p120 = scmp.ne.s32.totalorder %s112, %s115
      %p121 = scmp.eq.s32.totalorder %s13, 0
      %p122 = por %p120, %p121
      %p123 = scmp.ne.s32.totalorder %s112, %s115
      %p124 = scmp.eq.s32.totalorder %s18, 1
      %p125 = por %p123, %p124
      %p126 = scmp.ne.s32.totalorder %s115, %s116
      %p127 = scmp.eq.s32.totalorder %s18, 0
      %p128 = por %p126, %p127
      %p129 = scmp.ne.s32.totalorder %s115, %s116
      %p130 = scmp.eq.s32.totalorder %s19, 1
      %p131 = por %p129, %p130
      %p133 = scmp.ne.s32.totalorder %s116, %s132
      %p134 = scmp.eq.s32.totalorder %s19, 0
      %p135 = por %p133, %p134
      %p136 = scmp.le.s32.totalorder 1, %s13
      %p137 = scmp.lt.s32.totalorder %s13, 3
      %p138 = pnand %p136, %p137
      %p139 = pneg %p138
      // Predicated region
      $region9: #{tpu_custom_call.1} parent=5 // pred_check
        _
      $region10: #{tpu_custom_call.1} parent=5 // pred_check_branch
        %141 = sbr.rel (%p138) target = $region12
      $region11: #{tpu_custom_call.1} parent=5 // pred_region
        %s142 = ssub.s32 %s13, 1
        // Predicated region
        $region13: #{tpu_custom_call.1} parent=11 // pred_check
          %p143 = pneg %p60
        $region14: #{tpu_custom_call.1} parent=11 // pred_check_branch
          %145 = sbr.rel (%p143) target = $region16
        $region15: #{tpu_custom_call.1} parent=11 // pred_region
          _
        $region16: #{tpu_custom_call.1} parent=11 // pred_fallthru
          _
        // Predicated region
        $region17: #{tpu_custom_call.1} parent=11 // pred_check
          %p146 = pneg %p81
        $region18: #{tpu_custom_call.1} parent=11 // pred_check_branch
          %148 = sbr.rel (%p146) target = $region20
        $region19: #{tpu_custom_call.1} parent=11 // pred_region
          _
        $region20: #{tpu_custom_call.1} parent=11 // pred_fallthru
          _
        // Predicated region
        $region21: #{tpu_custom_call.1} parent=11 // pred_check
          %p149 = pneg %p102
        $region22: #{tpu_custom_call.1} parent=11 // pred_check_branch
          %151 = sbr.rel (%p149) target = $region24
        $region23: #{tpu_custom_call.1} parent=11 // pred_region
          _
        $region24: #{tpu_custom_call.1} parent=11 // pred_fallthru
          _
      $region12: #{tpu_custom_call.1} parent=5 // pred_fallthru
        _
      %p152 = scmp.lt.s32.totalorder %s13, 2
      // Predicated region
      $region25: #{tpu_custom_call.1} parent=5 // pred_check
        %p153 = pneg %p152
      $region26: #{tpu_custom_call.1} parent=5 // pred_check_branch
        %155 = sbr.rel (%p153) target = $region28
      $region27: #{tpu_custom_call.1} parent=5 // pred_region
        // Predicated region
        $region29: #{tpu_custom_call.1} parent=27 // pred_check
          %p156 = pneg %p33
        $region30: #{tpu_custom_call.1} parent=27 // pred_check_branch
          %158 = sbr.rel (%p156) target = $region32
        $region31: #{tpu_custom_call.1} parent=27 // pred_region
          %s159 = smul.u32 32, %s13
          %p160 = scmp.lt.s32.totalorder %s159, 63
          %s161 = scalar_select %p160, %s159, 63
          %s162 = smul.addr %s161, 8
          %s163 = scalar_lea.vmem %s0, %s162
          %s164 = smul.u32 32, %s13
        $region32: #{tpu_custom_call.1} parent=27 // pred_fallthru
          _
      $region28: #{tpu_custom_call.1} parent=5 // pred_fallthru
        _
      %p165 = scmp.le.s32.totalorder 1, %s13
      %p166 = scmp.lt.s32.totalorder %s13, 3
      %p167 = pnand %p165, %p166
      %p168 = pneg %p167
      // Predicated region
      $region33: #{tpu_custom_call.1} parent=5 // pred_check
        _
      $region34: #{tpu_custom_call.1} parent=5 // pred_check_branch
        %170 = sbr.rel (%p167) target = $region36
      $region35: #{tpu_custom_call.1} parent=5 // pred_region
        %s171 = ssub.s32 %s13, 1
        %s172 = smul.u32 32, %s18
        %p173 = scmp.lt.s32.totalorder %s172, 63
        %s174 = scalar_select %p173, %s172, 63
        %s175 = smul.addr %s174, 8
        %s176 = scalar_lea.vmem %s0, %s175
        %p177 = pneg %p39
        %p178 = pneg %p36
        %p179 = pneg %p60
        %p180 = pneg %p57
        %p181 = pneg %p81
        %p182 = pneg %p78
        %p183 = pneg %p102
        %p184 = pneg %p99
        %p185 = pneg %p128
        %p186 = pneg %p125
        %s187 = sand.u32 %s115, 1
        %s188 = scalar_lea.sflag [#allocation3], %s187
        %s189 = sand.u32 %s115, 1
        %s190 = smul.addr %s189, 256
        %s191 = scalar_lea.vmem [#allocation2], %s190
        %s192 = smul.u32 32, %s18
        %p193 = scmp.lt.s32.totalorder %s192, 63
        %s194 = scalar_select %p193, %s192, 63
        %s195 = smul.addr %s194, 8
        %s196 = scalar_lea.vmem %s0, %s195
        %s197 = smul.u32 32, %s18
        %s198 = smul.u32 32, %s18
        %v199 = vld [vmem:[%s196] sm:$0xff]
        %v200 = vld [vmem:[%s196 + $0x8] sm:$0xff]
        %v201 = vld [vmem:[%s196 + $0x10] sm:$0xff]
        %v202 = vld [vmem:[%s196 + $0x18] sm:$0xff]
        %v203 = vld [vmem:[%s196 + $0x20] sm:$0xff]
        %v204 = vld [vmem:[%s196 + $0x28] sm:$0xff]
        %v205 = vld [vmem:[%s196 + $0x30] sm:$0xff]
        %v206 = vld [vmem:[%s196 + $0x38] sm:$0xff]
        %v207 = vld [vmem:[%s196 + $0x40] sm:$0xff]
        %v208 = vld [vmem:[%s196 + $0x48] sm:$0xff]
        %v209 = vld [vmem:[%s196 + $0x50] sm:$0xff]
        %v210 = vld [vmem:[%s196 + $0x58] sm:$0xff]
        %v211 = vld [vmem:[%s196 + $0x60] sm:$0xff]
        %v212 = vld [vmem:[%s196 + $0x68] sm:$0xff]
        %v213 = vld [vmem:[%s196 + $0x70] sm:$0xff]
        %v214 = vld [vmem:[%s196 + $0x78] sm:$0xff]
        %v215 = vld [vmem:[%s196 + $0x80] sm:$0xff]
        %v216 = vld [vmem:[%s196 + $0x88] sm:$0xff]
        %v217 = vld [vmem:[%s196 + $0x90] sm:$0xff]
        %v218 = vld [vmem:[%s196 + $0x98] sm:$0xff]
        %v219 = vld [vmem:[%s196 + $0xa0] sm:$0xff]
        %v220 = vld [vmem:[%s196 + $0xa8] sm:$0xff]
        %v221 = vld [vmem:[%s196 + $0xb0] sm:$0xff]
        %v222 = vld [vmem:[%s196 + $0xb8] sm:$0xff]
        %v223 = vld [vmem:[%s196 + $0xc0] sm:$0xff]
        %v224 = vld [vmem:[%s196 + $0xc8] sm:$0xff]
        %v225 = vld [vmem:[%s196 + $0xd0] sm:$0xff]
        %v226 = vld [vmem:[%s196 + $0xd8] sm:$0xff]
        %v227 = vld [vmem:[%s196 + $0xe0] sm:$0xff]
        %v228 = vld [vmem:[%s196 + $0xe8] sm:$0xff]
        %v229 = vld [vmem:[%s196 + $0xf0] sm:$0xff]
        %v230 = vld [vmem:[%s196 + $0xf8] sm:$0xff]
        %v231 = vld [vmem:[%s1] sm:$0xff]
        %v232 = vld [vmem:[%s1 + $0x8] sm:$0xff]
        %v233 = vld [vmem:[%s1 + $0x10] sm:$0xff]
        %v234 = vld [vmem:[%s1 + $0x18] sm:$0xff]
        %vm235 = vcmask 261120
        %v237 = vsel %vm235, %v199, 0
        %v240 = vsel %vm235, %v200, 0
        %v243 = vsel %vm235, %v201, 0
        %v246 = vsel %vm235, %v202, 0
        %v249 = vsel %vm235, %v203, 0
        %v252 = vsel %vm235, %v204, 0
        %v255 = vsel %vm235, %v205, 0
        %v258 = vsel %vm235, %v206, 0
        %v261 = vsel %vm235, %v207, 0
        %v264 = vsel %vm235, %v208, 0
        %v267 = vsel %vm235, %v209, 0
        %v270 = vsel %vm235, %v210, 0
        %v273 = vsel %vm235, %v211, 0
        %v276 = vsel %vm235, %v212, 0
        %v279 = vsel %vm235, %v213, 0
        %v282 = vsel %vm235, %v214, 0
        %v285 = vsel %vm235, %v215, 0
        %v288 = vsel %vm235, %v216, 0
        %v291 = vsel %vm235, %v217, 0
        %v294 = vsel %vm235, %v218, 0
        %v297 = vsel %vm235, %v219, 0
        %v300 = vsel %vm235, %v220, 0
        %v303 = vsel %vm235, %v221, 0
        %v306 = vsel %vm235, %v222, 0
        %v309 = vsel %vm235, %v223, 0
        %v312 = vsel %vm235, %v224, 0
        %v315 = vsel %vm235, %v225, 0
        %v318 = vsel %vm235, %v226, 0
        %v321 = vsel %vm235, %v227, 0
        %v324 = vsel %vm235, %v228, 0
        %v327 = vsel %vm235, %v229, 0
        %v330 = vsel %vm235, %v230, 0
        %332 = vmatpush.msra.mxu0 0.0
        %333 = vmatpush.msra.mxu0 0.0
        %334 = vmatpush.msra.mxu0 0.0
        %335 = vmatpush.msra.mxu0 0.0
        %336 = vmatpush.msra.mxu0 0.0
        %337 = vmatpush.msra.mxu0 0.0
        %338 = vmatpush.msra.mxu0 0.0
        %339 = vmatpush.msra.mxu0 0.0
        %340 = vmatpush.msra.mxu0 0.0
        %341 = vmatpush.msra.mxu0 0.0
        %342 = vmatpush.msra.mxu0 0.0
        %343 = vmatpush.msra.mxu0 0.0
        %v344 = vand.u32 %v234, 4294901760
        %345 = vmatpush.msra.mxu0 %v344
        %v346 = vand.u32 %v233, 4294901760
        %347 = vmatpush.msra.mxu0 %v346
        %v348 = vand.u32 %v232, 4294901760
        %349 = vmatpush.msra.mxu0 %v348
        %v350 = vand.u32 %v231, 4294901760
        %351 = vmatpush.msra.mxu0 %v350
        %v352 = vand.u32 %v237, 4294901760
        %v353 = vsub.f32 %v237, %v352
        %v354 = vand.u32 %v353, 4294901760
        %v355 = vsub.f32 %v353, %v354
        %v356 = vand.u32 %v355, 4294901760
        %357 = vmatmul.f32.gmra.mxu0 %v356
        %v358 = vpop.f32.mrf.mxu0
        %v359 = vadd.f32 0.0, %v358
        %v360 = vand.u32 %v240, 4294901760
        %v361 = vsub.f32 %v240, %v360
        %v362 = vand.u32 %v361, 4294901760
        %v363 = vsub.f32 %v361, %v362
        %v364 = vand.u32 %v363, 4294901760
        %365 = vmatmul.f32.gmra.mxu0 %v364
        %v366 = vpop.f32.mrf.mxu0
        %v367 = vadd.f32 0.0, %v366
        %v368 = vand.u32 %v243, 4294901760
        %v369 = vsub.f32 %v243, %v368
        %v370 = vand.u32 %v369, 4294901760
        %v371 = vsub.f32 %v369, %v370
        %v372 = vand.u32 %v371, 4294901760
        %373 = vmatmul.f32.gmra.mxu0 %v372
        %v374 = vpop.f32.mrf.mxu0
        %v375 = vadd.f32 0.0, %v374
        %v376 = vand.u32 %v246, 4294901760
        %v377 = vsub.f32 %v246, %v376
        %v378 = vand.u32 %v377, 4294901760
        %v379 = vsub.f32 %v377, %v378
        %v380 = vand.u32 %v379, 4294901760
        %381 = vmatmul.f32.gmra.mxu0 %v380
        %v382 = vpop.f32.mrf.mxu0
        %v383 = vadd.f32 0.0, %v382
        %v384 = vand.u32 %v249, 4294901760
        %v385 = vsub.f32 %v249, %v384
        %v386 = vand.u32 %v385, 4294901760
        %v387 = vsub.f32 %v385, %v386
        %v388 = vand.u32 %v387, 4294901760
        %389 = vmatmul.f32.gmra.mxu0 %v388
        %v390 = vpop.f32.mrf.mxu0
        %v391 = vadd.f32 0.0, %v390
        %v392 = vand.u32 %v252, 4294901760
        %v393 = vsub.f32 %v252, %v392
        %v394 = vand.u32 %v393, 4294901760
        %v395 = vsub.f32 %v393, %v394
        %v396 = vand.u32 %v395, 4294901760
        %397 = vmatmul.f32.gmra.mxu0 %v396
        %v398 = vpop.f32.mrf.mxu0
        %v399 = vadd.f32 0.0, %v398
        %v400 = vand.u32 %v255, 4294901760
        %v401 = vsub.f32 %v255, %v400
        %v402 = vand.u32 %v401, 4294901760
        %v403 = vsub.f32 %v401, %v402
        %v404 = vand.u32 %v403, 4294901760
        %405 = vmatmul.f32.gmra.mxu0 %v404
        %v406 = vpop.f32.mrf.mxu0
        %v407 = vadd.f32 0.0, %v406
        %v408 = vand.u32 %v258, 4294901760
        %v409 = vsub.f32 %v258, %v408
        %v410 = vand.u32 %v409, 4294901760
        %v411 = vsub.f32 %v409, %v410
        %v412 = vand.u32 %v411, 4294901760
        %413 = vmatmul.f32.gmra.mxu0 %v412
        %v414 = vpop.f32.mrf.mxu0
        %v415 = vadd.f32 0.0, %v414
        %v416 = vand.u32 %v261, 4294901760
        %v417 = vsub.f32 %v261, %v416
        %v418 = vand.u32 %v417, 4294901760
        %v419 = vsub.f32 %v417, %v418
        %v420 = vand.u32 %v419, 4294901760
        %421 = vmatmul.f32.gmra.mxu0 %v420
        %v422 = vpop.f32.mrf.mxu0
        %v423 = vadd.f32 0.0, %v422
        %v424 = vand.u32 %v264, 4294901760
        %v425 = vsub.f32 %v264, %v424
        %v426 = vand.u32 %v425, 4294901760
        %v427 = vsub.f32 %v425, %v426
        %v428 = vand.u32 %v427, 4294901760
        %429 = vmatmul.f32.gmra.mxu0 %v428
        %v430 = vpop.f32.mrf.mxu0
        %v431 = vadd.f32 0.0, %v430
        %v432 = vand.u32 %v267, 4294901760
        %v433 = vsub.f32 %v267, %v432
        %v434 = vand.u32 %v433, 4294901760
        %v435 = vsub.f32 %v433, %v434
        %v436 = vand.u32 %v435, 4294901760
        %437 = vmatmul.f32.gmra.mxu0 %v436
        %v438 = vpop.f32.mrf.mxu0
        %v439 = vadd.f32 0.0, %v438
        %v440 = vand.u32 %v270, 4294901760
        %v441 = vsub.f32 %v270, %v440
        %v442 = vand.u32 %v441, 4294901760
        %v443 = vsub.f32 %v441, %v442
        %v444 = vand.u32 %v443, 4294901760
        %445 = vmatmul.f32.gmra.mxu0 %v444
        %v446 = vpop.f32.mrf.mxu0
        %v447 = vadd.f32 0.0, %v446
        %v448 = vand.u32 %v273, 4294901760
        %v449 = vsub.f32 %v273, %v448
        %v450 = vand.u32 %v449, 4294901760
        %v451 = vsub.f32 %v449, %v450
        %v452 = vand.u32 %v451, 4294901760
        %453 = vmatmul.f32.gmra.mxu0 %v452
        %v454 = vpop.f32.mrf.mxu0
        %v455 = vadd.f32 0.0, %v454
        %v456 = vand.u32 %v276, 4294901760
        %v457 = vsub.f32 %v276, %v456
        %v458 = vand.u32 %v457, 4294901760
        %v459 = vsub.f32 %v457, %v458
        %v460 = vand.u32 %v459, 4294901760
        %461 = vmatmul.f32.gmra.mxu0 %v460
        %v462 = vpop.f32.mrf.mxu0
        %v463 = vadd.f32 0.0, %v462
        %v464 = vand.u32 %v279, 4294901760
        %v465 = vsub.f32 %v279, %v464
        %v466 = vand.u32 %v465, 4294901760
        %v467 = vsub.f32 %v465, %v466
        %v468 = vand.u32 %v467, 4294901760
        %469 = vmatmul.f32.gmra.mxu0 %v468
        %v470 = vpop.f32.mrf.mxu0
        %v471 = vadd.f32 0.0, %v470
        %v472 = vand.u32 %v282, 4294901760
        %v473 = vsub.f32 %v282, %v472
        %v474 = vand.u32 %v473, 4294901760
        %v475 = vsub.f32 %v473, %v474
        %v476 = vand.u32 %v475, 4294901760
        %477 = vmatmul.f32.gmra.mxu0 %v476
        %v478 = vpop.f32.mrf.mxu0
        %v479 = vadd.f32 0.0, %v478
        %v480 = vand.u32 %v285, 4294901760
        %v481 = vsub.f32 %v285, %v480
        %v482 = vand.u32 %v481, 4294901760
        %v483 = vsub.f32 %v481, %v482
        %v484 = vand.u32 %v483, 4294901760
        %485 = vmatmul.f32.gmra.mxu0 %v484
        %v486 = vpop.f32.mrf.mxu0
        %v487 = vadd.f32 0.0, %v486
        %v488 = vand.u32 %v288, 4294901760
        %v489 = vsub.f32 %v288, %v488
        %v490 = vand.u32 %v489, 4294901760
        %v491 = vsub.f32 %v489, %v490
        %v492 = vand.u32 %v491, 4294901760
        %493 = vmatmul.f32.gmra.mxu0 %v492
        %v494 = vpop.f32.mrf.mxu0
        %v495 = vadd.f32 0.0, %v494
        %v496 = vand.u32 %v291, 4294901760
        %v497 = vsub.f32 %v291, %v496
        %v498 = vand.u32 %v497, 4294901760
        %v499 = vsub.f32 %v497, %v498
        %v500 = vand.u32 %v499, 4294901760
        %501 = vmatmul.f32.gmra.mxu0 %v500
        %v502 = vpop.f32.mrf.mxu0
        %v503 = vadd.f32 0.0, %v502
        %v504 = vand.u32 %v294, 4294901760
        %v505 = vsub.f32 %v294, %v504
        %v506 = vand.u32 %v505, 4294901760
        %v507 = vsub.f32 %v505, %v506
        %v508 = vand.u32 %v507, 4294901760
        %509 = vmatmul.f32.gmra.mxu0 %v508
        %v510 = vpop.f32.mrf.mxu0
        %v511 = vadd.f32 0.0, %v510
        %v512 = vand.u32 %v297, 4294901760
        %v513 = vsub.f32 %v297, %v512
        %v514 = vand.u32 %v513, 4294901760
        %v515 = vsub.f32 %v513, %v514
        %v516 = vand.u32 %v515, 4294901760
        %517 = vmatmul.f32.gmra.mxu0 %v516
        %v518 = vpop.f32.mrf.mxu0
        %v519 = vadd.f32 0.0, %v518
        %v520 = vand.u32 %v300, 4294901760
        %v521 = vsub.f32 %v300, %v520
        %v522 = vand.u32 %v521, 4294901760
        %v523 = vsub.f32 %v521, %v522
        %v524 = vand.u32 %v523, 4294901760
        %525 = vmatmul.f32.gmra.mxu0 %v524
        %v526 = vpop.f32.mrf.mxu0
        %v527 = vadd.f32 0.0, %v526
        %v528 = vand.u32 %v303, 4294901760
        %v529 = vsub.f32 %v303, %v528
        %v530 = vand.u32 %v529, 4294901760
        %v531 = vsub.f32 %v529, %v530
        %v532 = vand.u32 %v531, 4294901760
        %533 = vmatmul.f32.gmra.mxu0 %v532
        %v534 = vpop.f32.mrf.mxu0
        %v535 = vadd.f32 0.0, %v534
        %v536 = vand.u32 %v306, 4294901760
        %v537 = vsub.f32 %v306, %v536
        %v538 = vand.u32 %v537, 4294901760
        %v539 = vsub.f32 %v537, %v538
        %v540 = vand.u32 %v539, 4294901760
        %541 = vmatmul.f32.gmra.mxu0 %v540
        %v542 = vpop.f32.mrf.mxu0
        %v543 = vadd.f32 0.0, %v542
        %v544 = vand.u32 %v309, 4294901760
        %v545 = vsub.f32 %v309, %v544
        %v546 = vand.u32 %v545, 4294901760
        %v547 = vsub.f32 %v545, %v546
        %v548 = vand.u32 %v547, 4294901760
        %549 = vmatmul.f32.gmra.mxu0 %v548
        %v550 = vpop.f32.mrf.mxu0
        %v551 = vadd.f32 0.0, %v550
        %v552 = vand.u32 %v312, 4294901760
        %v553 = vsub.f32 %v312, %v552
        %v554 = vand.u32 %v553, 4294901760
        %v555 = vsub.f32 %v553, %v554
        %v556 = vand.u32 %v555, 4294901760
        %557 = vmatmul.f32.gmra.mxu0 %v556
        %v558 = vpop.f32.mrf.mxu0
        %v559 = vadd.f32 0.0, %v558
        %v560 = vand.u32 %v315, 4294901760
        %v561 = vsub.f32 %v315, %v560
        %v562 = vand.u32 %v561, 4294901760
        %v563 = vsub.f32 %v561, %v562
        %v564 = vand.u32 %v563, 4294901760
        %565 = vmatmul.f32.gmra.mxu0 %v564
        %v566 = vpop.f32.mrf.mxu0
        %v567 = vadd.f32 0.0, %v566
        %v568 = vand.u32 %v318, 4294901760
        %v569 = vsub.f32 %v318, %v568
        %v570 = vand.u32 %v569, 4294901760
        %v571 = vsub.f32 %v569, %v570
        %v572 = vand.u32 %v571, 4294901760
        %573 = vmatmul.f32.gmra.mxu0 %v572
        %v574 = vpop.f32.mrf.mxu0
        %v575 = vadd.f32 0.0, %v574
        %v576 = vand.u32 %v321, 4294901760
        %v577 = vsub.f32 %v321, %v576
        %v578 = vand.u32 %v577, 4294901760
        %v579 = vsub.f32 %v577, %v578
        %v580 = vand.u32 %v579, 4294901760
        %581 = vmatmul.f32.gmra.mxu0 %v580
        %v582 = vpop.f32.mrf.mxu0
        %v583 = vadd.f32 0.0, %v582
        %v584 = vand.u32 %v324, 4294901760
        %v585 = vsub.f32 %v324, %v584
        %v586 = vand.u32 %v585, 4294901760
        %v587 = vsub.f32 %v585, %v586
        %v588 = vand.u32 %v587, 4294901760
        %589 = vmatmul.f32.gmra.mxu0 %v588
        %v590 = vpop.f32.mrf.mxu0
        %v591 = vadd.f32 0.0, %v590
        %v592 = vand.u32 %v327, 4294901760
        %v593 = vsub.f32 %v327, %v592
        %v594 = vand.u32 %v593, 4294901760
        %v595 = vsub.f32 %v593, %v594
        %v596 = vand.u32 %v595, 4294901760
        %597 = vmatmul.f32.gmra.mxu0 %v596
        %v598 = vpop.f32.mrf.mxu0
        %v599 = vadd.f32 0.0, %v598
        %v600 = vand.u32 %v330, 4294901760
        %v601 = vsub.f32 %v330, %v600
        %v602 = vand.u32 %v601, 4294901760
        %v603 = vsub.f32 %v601, %v602
        %v604 = vand.u32 %v603, 4294901760
        %605 = vmatmul.f32.gmra.mxu0 %v604
        %v606 = vpop.f32.mrf.mxu0
        %v607 = vadd.f32 0.0, %v606
        %608 = vdwg.mxu0
        %609 = vmatpush.msra.mxu0 0.0
        %610 = vmatpush.msra.mxu0 0.0
        %611 = vmatpush.msra.mxu0 0.0
        %612 = vmatpush.msra.mxu0 0.0
        %613 = vmatpush.msra.mxu0 0.0
        %614 = vmatpush.msra.mxu0 0.0
        %615 = vmatpush.msra.mxu0 0.0
        %616 = vmatpush.msra.mxu0 0.0
        %617 = vmatpush.msra.mxu0 0.0
        %618 = vmatpush.msra.mxu0 0.0
        %619 = vmatpush.msra.mxu0 0.0
        %620 = vmatpush.msra.mxu0 0.0
        %v621 = vand.u32 %v234, 4294901760
        %v622 = vsub.f32 %v234, %v621
        %v623 = vand.u32 %v622, 4294901760
        %v624 = vsub.f32 %v622, %v623
        %v625 = vand.u32 %v624, 4294901760
        %626 = vmatpush.msra.mxu0 %v625
        %v627 = vand.u32 %v233, 4294901760
        %v628 = vsub.f32 %v233, %v627
        %v629 = vand.u32 %v628, 4294901760
        %v630 = vsub.f32 %v628, %v629
        %v631 = vand.u32 %v630, 4294901760
        %632 = vmatpush.msra.mxu0 %v631
        %v633 = vand.u32 %v232, 4294901760
        %v634 = vsub.f32 %v232, %v633
        %v635 = vand.u32 %v634, 4294901760
        %v636 = vsub.f32 %v634, %v635
        %v637 = vand.u32 %v636, 4294901760
        %638 = vmatpush.msra.mxu0 %v637
        %v639 = vand.u32 %v231, 4294901760
        %v640 = vsub.f32 %v231, %v639
        %v641 = vand.u32 %v640, 4294901760
        %v642 = vsub.f32 %v640, %v641
        %v643 = vand.u32 %v642, 4294901760
        %644 = vmatpush.msra.mxu0 %v643
        %v645 = vand.u32 %v237, 4294901760
        %646 = vmatmul.f32.gmra.mxu0 %v645
        %v647 = vpop.f32.mrf.mxu0
        %v648 = vadd.f32 %v359, %v647
        %v649 = vand.u32 %v240, 4294901760
        %650 = vmatmul.f32.gmra.mxu0 %v649
        %v651 = vpop.f32.mrf.mxu0
        %v652 = vadd.f32 %v367, %v651
        %v653 = vand.u32 %v243, 4294901760
        %654 = vmatmul.f32.gmra.mxu0 %v653
        %v655 = vpop.f32.mrf.mxu0
        %v656 = vadd.f32 %v375, %v655
        %v657 = vand.u32 %v246, 4294901760
        %658 = vmatmul.f32.gmra.mxu0 %v657
        %v659 = vpop.f32.mrf.mxu0
        %v660 = vadd.f32 %v383, %v659
        %v661 = vand.u32 %v249, 4294901760
        %662 = vmatmul.f32.gmra.mxu0 %v661
        %v663 = vpop.f32.mrf.mxu0
        %v664 = vadd.f32 %v391, %v663
        %v665 = vand.u32 %v252, 4294901760
        %666 = vmatmul.f32.gmra.mxu0 %v665
        %v667 = vpop.f32.mrf.mxu0
        %v668 = vadd.f32 %v399, %v667
        %v669 = vand.u32 %v255, 4294901760
        %670 = vmatmul.f32.gmra.mxu0 %v669
        %v671 = vpop.f32.mrf.mxu0
        %v672 = vadd.f32 %v407, %v671
        %v673 = vand.u32 %v258, 4294901760
        %674 = vmatmul.f32.gmra.mxu0 %v673
        %v675 = vpop.f32.mrf.mxu0
        %v676 = vadd.f32 %v415, %v675
        %v677 = vand.u32 %v261, 4294901760
        %678 = vmatmul.f32.gmra.mxu0 %v677
        %v679 = vpop.f32.mrf.mxu0
        %v680 = vadd.f32 %v423, %v679
        %v681 = vand.u32 %v264, 4294901760
        %682 = vmatmul.f32.gmra.mxu0 %v681
        %v683 = vpop.f32.mrf.mxu0
        %v684 = vadd.f32 %v431, %v683
        %v685 = vand.u32 %v267, 4294901760
        %686 = vmatmul.f32.gmra.mxu0 %v685
        %v687 = vpop.f32.mrf.mxu0
        %v688 = vadd.f32 %v439, %v687
        %v689 = vand.u32 %v270, 4294901760
        %690 = vmatmul.f32.gmra.mxu0 %v689
        %v691 = vpop.f32.mrf.mxu0
        %v692 = vadd.f32 %v447, %v691
        %v693 = vand.u32 %v273, 4294901760
        %694 = vmatmul.f32.gmra.mxu0 %v693
        %v695 = vpop.f32.mrf.mxu0
        %v696 = vadd.f32 %v455, %v695
        %v697 = vand.u32 %v276, 4294901760
        %698 = vmatmul.f32.gmra.mxu0 %v697
        %v699 = vpop.f32.mrf.mxu0
        %v700 = vadd.f32 %v463, %v699
        %v701 = vand.u32 %v279, 4294901760
        %702 = vmatmul.f32.gmra.mxu0 %v701
        %v703 = vpop.f32.mrf.mxu0
        %v704 = vadd.f32 %v471, %v703
        %v705 = vand.u32 %v282, 4294901760
        %706 = vmatmul.f32.gmra.mxu0 %v705
        %v707 = vpop.f32.mrf.mxu0
        %v708 = vadd.f32 %v479, %v707
        %v709 = vand.u32 %v285, 4294901760
        %710 = vmatmul.f32.gmra.mxu0 %v709
        %v711 = vpop.f32.mrf.mxu0
        %v712 = vadd.f32 %v487, %v711
        %v713 = vand.u32 %v288, 4294901760
        %714 = vmatmul.f32.gmra.mxu0 %v713
        %v715 = vpop.f32.mrf.mxu0
        %v716 = vadd.f32 %v495, %v715
        %v717 = vand.u32 %v291, 4294901760
        %718 = vmatmul.f32.gmra.mxu0 %v717
        %v719 = vpop.f32.mrf.mxu0
        %v720 = vadd.f32 %v503, %v719
        %v721 = vand.u32 %v294, 4294901760
        %722 = vmatmul.f32.gmra.mxu0 %v721
        %v723 = vpop.f32.mrf.mxu0
        %v724 = vadd.f32 %v511, %v723
        %v725 = vand.u32 %v297, 4294901760
        %726 = vmatmul.f32.gmra.mxu0 %v725
        %v727 = vpop.f32.mrf.mxu0
        %v728 = vadd.f32 %v519, %v727
        %v729 = vand.u32 %v300, 4294901760
        %730 = vmatmul.f32.gmra.mxu0 %v729
        %v731 = vpop.f32.mrf.mxu0
        %v732 = vadd.f32 %v527, %v731
        %v733 = vand.u32 %v303, 4294901760
        %734 = vmatmul.f32.gmra.mxu0 %v733
        %v735 = vpop.f32.mrf.mxu0
        %v736 = vadd.f32 %v535, %v735
        %v737 = vand.u32 %v306, 4294901760
        %738 = vmatmul.f32.gmra.mxu0 %v737
        %v739 = vpop.f32.mrf.mxu0
        %v740 = vadd.f32 %v543, %v739
        %v741 = vand.u32 %v309, 4294901760
        %742 = vmatmul.f32.gmra.mxu0 %v741
        %v743 = vpop.f32.mrf.mxu0
        %v744 = vadd.f32 %v551, %v743
        %v745 = vand.u32 %v312, 4294901760
        %746 = vmatmul.f32.gmra.mxu0 %v745
        %v747 = vpop.f32.mrf.mxu0
        %v748 = vadd.f32 %v559, %v747
        %v749 = vand.u32 %v315, 4294901760
        %750 = vmatmul.f32.gmra.mxu0 %v749
        %v751 = vpop.f32.mrf.mxu0
        %v752 = vadd.f32 %v567, %v751
        %v753 = vand.u32 %v318, 4294901760
        %754 = vmatmul.f32.gmra.mxu0 %v753
        %v755 = vpop.f32.mrf.mxu0
        %v756 = vadd.f32 %v575, %v755
        %v757 = vand.u32 %v321, 4294901760
        %758 = vmatmul.f32.gmra.mxu0 %v757
        %v759 = vpop.f32.mrf.mxu0
        %v760 = vadd.f32 %v583, %v759
        %v761 = vand.u32 %v324, 4294901760
        %762 = vmatmul.f32.gmra.mxu0 %v761
        %v763 = vpop.f32.mrf.mxu0
        %v764 = vadd.f32 %v591, %v763
        %v765 = vand.u32 %v327, 4294901760
        %766 = vmatmul.f32.gmra.mxu0 %v765
        %v767 = vpop.f32.mrf.mxu0
        %v768 = vadd.f32 %v599, %v767
        %v769 = vand.u32 %v330, 4294901760
        %770 = vmatmul.f32.gmra.mxu0 %v769
        %v771 = vpop.f32.mrf.mxu0
        %v772 = vadd.f32 %v607, %v771
        %773 = vdwg.mxu0
        %774 = vmatpush.msra.mxu0 0.0
        %775 = vmatpush.msra.mxu0 0.0
        %776 = vmatpush.msra.mxu0 0.0
        %777 = vmatpush.msra.mxu0 0.0
        %778 = vmatpush.msra.mxu0 0.0
        %779 = vmatpush.msra.mxu0 0.0
        %780 = vmatpush.msra.mxu0 0.0
        %781 = vmatpush.msra.mxu0 0.0
        %782 = vmatpush.msra.mxu0 0.0
        %783 = vmatpush.msra.mxu0 0.0
        %784 = vmatpush.msra.mxu0 0.0
        %785 = vmatpush.msra.mxu0 0.0
        %v786 = vand.u32 %v234, 4294901760
        %v787 = vsub.f32 %v234, %v786
        %788 = vmatpush.msra.mxu0 %v787
        %v789 = vand.u32 %v233, 4294901760
        %v790 = vsub.f32 %v233, %v789
        %791 = vmatpush.msra.mxu0 %v790
        %v792 = vand.u32 %v232, 4294901760
        %v793 = vsub.f32 %v232, %v792
        %794 = vmatpush.msra.mxu0 %v793
        %v795 = vand.u32 %v231, 4294901760
        %v796 = vsub.f32 %v231, %v795
        %797 = vmatpush.msra.mxu0 %v796
        %v798 = vand.u32 %v237, 4294901760
        %v799 = vsub.f32 %v237, %v798
        %800 = vmatmul.f32.gmra.mxu0 %v799
        %v801 = vpop.f32.mrf.mxu0
        %v802 = vadd.f32 %v648, %v801
        %v803 = vand.u32 %v240, 4294901760
        %v804 = vsub.f32 %v240, %v803
        %805 = vmatmul.f32.gmra.mxu0 %v804
        %v806 = vpop.f32.mrf.mxu0
        %v807 = vadd.f32 %v652, %v806
        %v808 = vand.u32 %v243, 4294901760
        %v809 = vsub.f32 %v243, %v808
        %810 = vmatmul.f32.gmra.mxu0 %v809
        %v811 = vpop.f32.mrf.mxu0
        %v812 = vadd.f32 %v656, %v811
        %v813 = vand.u32 %v246, 4294901760
        %v814 = vsub.f32 %v246, %v813
        %815 = vmatmul.f32.gmra.mxu0 %v814
        %v816 = vpop.f32.mrf.mxu0
        %v817 = vadd.f32 %v660, %v816
        %v818 = vand.u32 %v249, 4294901760
        %v819 = vsub.f32 %v249, %v818
        %820 = vmatmul.f32.gmra.mxu0 %v819
        %v821 = vpop.f32.mrf.mxu0
        %v822 = vadd.f32 %v664, %v821
        %v823 = vand.u32 %v252, 4294901760
        %v824 = vsub.f32 %v252, %v823
        %825 = vmatmul.f32.gmra.mxu0 %v824
        %v826 = vpop.f32.mrf.mxu0
        %v827 = vadd.f32 %v668, %v826
        %v828 = vand.u32 %v255, 4294901760
        %v829 = vsub.f32 %v255, %v828
        %830 = vmatmul.f32.gmra.mxu0 %v829
        %v831 = vpop.f32.mrf.mxu0
        %v832 = vadd.f32 %v672, %v831
        %v833 = vand.u32 %v258, 4294901760
        %v834 = vsub.f32 %v258, %v833
        %835 = vmatmul.f32.gmra.mxu0 %v834
        %v836 = vpop.f32.mrf.mxu0
        %v837 = vadd.f32 %v676, %v836
        %v838 = vand.u32 %v261, 4294901760
        %v839 = vsub.f32 %v261, %v838
        %840 = vmatmul.f32.gmra.mxu0 %v839
        %v841 = vpop.f32.mrf.mxu0
        %v842 = vadd.f32 %v680, %v841
        %v843 = vand.u32 %v264, 4294901760
        %v844 = vsub.f32 %v264, %v843
        %845 = vmatmul.f32.gmra.mxu0 %v844
        %v846 = vpop.f32.mrf.mxu0
        %v847 = vadd.f32 %v684, %v846
        %v848 = vand.u32 %v267, 4294901760
        %v849 = vsub.f32 %v267, %v848
        %850 = vmatmul.f32.gmra.mxu0 %v849
        %v851 = vpop.f32.mrf.mxu0
        %v852 = vadd.f32 %v688, %v851
        %v853 = vand.u32 %v270, 4294901760
        %v854 = vsub.f32 %v270, %v853
        %855 = vmatmul.f32.gmra.mxu0 %v854
        %v856 = vpop.f32.mrf.mxu0
        %v857 = vadd.f32 %v692, %v856
        %v858 = vand.u32 %v273, 4294901760
        %v859 = vsub.f32 %v273, %v858
        %860 = vmatmul.f32.gmra.mxu0 %v859
        %v861 = vpop.f32.mrf.mxu0
        %v862 = vadd.f32 %v696, %v861
        %v863 = vand.u32 %v276, 4294901760
        %v864 = vsub.f32 %v276, %v863
        %865 = vmatmul.f32.gmra.mxu0 %v864
        %v866 = vpop.f32.mrf.mxu0
        %v867 = vadd.f32 %v700, %v866
        %v868 = vand.u32 %v279, 4294901760
        %v869 = vsub.f32 %v279, %v868
        %870 = vmatmul.f32.gmra.mxu0 %v869
        %v871 = vpop.f32.mrf.mxu0
        %v872 = vadd.f32 %v704, %v871
        %v873 = vand.u32 %v282, 4294901760
        %v874 = vsub.f32 %v282, %v873
        %875 = vmatmul.f32.gmra.mxu0 %v874
        %v876 = vpop.f32.mrf.mxu0
        %v877 = vadd.f32 %v708, %v876
        %v878 = vand.u32 %v285, 4294901760
        %v879 = vsub.f32 %v285, %v878
        %880 = vmatmul.f32.gmra.mxu0 %v879
        %v881 = vpop.f32.mrf.mxu0
        %v882 = vadd.f32 %v712, %v881
        %v883 = vand.u32 %v288, 4294901760
        %v884 = vsub.f32 %v288, %v883
        %885 = vmatmul.f32.gmra.mxu0 %v884
        %v886 = vpop.f32.mrf.mxu0
        %v887 = vadd.f32 %v716, %v886
        %v888 = vand.u32 %v291, 4294901760
        %v889 = vsub.f32 %v291, %v888
        %890 = vmatmul.f32.gmra.mxu0 %v889
        %v891 = vpop.f32.mrf.mxu0
        %v892 = vadd.f32 %v720, %v891
        %v893 = vand.u32 %v294, 4294901760
        %v894 = vsub.f32 %v294, %v893
        %895 = vmatmul.f32.gmra.mxu0 %v894
        %v896 = vpop.f32.mrf.mxu0
        %v897 = vadd.f32 %v724, %v896
        %v898 = vand.u32 %v297, 4294901760
        %v899 = vsub.f32 %v297, %v898
        %900 = vmatmul.f32.gmra.mxu0 %v899
        %v901 = vpop.f32.mrf.mxu0
        %v902 = vadd.f32 %v728, %v901
        %v903 = vand.u32 %v300, 4294901760
        %v904 = vsub.f32 %v300, %v903
        %905 = vmatmul.f32.gmra.mxu0 %v904
        %v906 = vpop.f32.mrf.mxu0
        %v907 = vadd.f32 %v732, %v906
        %v908 = vand.u32 %v303, 4294901760
        %v909 = vsub.f32 %v303, %v908
        %910 = vmatmul.f32.gmra.mxu0 %v909
        %v911 = vpop.f32.mrf.mxu0
        %v912 = vadd.f32 %v736, %v911
        %v913 = vand.u32 %v306, 4294901760
        %v914 = vsub.f32 %v306, %v913
        %915 = vmatmul.f32.gmra.mxu0 %v914
        %v916 = vpop.f32.mrf.mxu0
        %v917 = vadd.f32 %v740, %v916
        %v918 = vand.u32 %v309, 4294901760
        %v919 = vsub.f32 %v309, %v918
        %920 = vmatmul.f32.gmra.mxu0 %v919
        %v921 = vpop.f32.mrf.mxu0
        %v922 = vadd.f32 %v744, %v921
        %v923 = vand.u32 %v312, 4294901760
        %v924 = vsub.f32 %v312, %v923
        %925 = vmatmul.f32.gmra.mxu0 %v924
        %v926 = vpop.f32.mrf.mxu0
        %v927 = vadd.f32 %v748, %v926
        %v928 = vand.u32 %v315, 4294901760
        %v929 = vsub.f32 %v315, %v928
        %930 = vmatmul.f32.gmra.mxu0 %v929
        %v931 = vpop.f32.mrf.mxu0
        %v932 = vadd.f32 %v752, %v931
        %v933 = vand.u32 %v318, 4294901760
        %v934 = vsub.f32 %v318, %v933
        %935 = vmatmul.f32.gmra.mxu0 %v934
        %v936 = vpop.f32.mrf.mxu0
        %v937 = vadd.f32 %v756, %v936
        %v938 = vand.u32 %v321, 4294901760
        %v939 = vsub.f32 %v321, %v938
        %940 = vmatmul.f32.gmra.mxu0 %v939
        %v941 = vpop.f32.mrf.mxu0
        %v942 = vadd.f32 %v760, %v941
        %v943 = vand.u32 %v324, 4294901760
        %v944 = vsub.f32 %v324, %v943
        %945 = vmatmul.f32.gmra.mxu0 %v944
        %v946 = vpop.f32.mrf.mxu0
        %v947 = vadd.f32 %v764, %v946
        %v948 = vand.u32 %v327, 4294901760
        %v949 = vsub.f32 %v327, %v948
        %950 = vmatmul.f32.gmra.mxu0 %v949
        %v951 = vpop.f32.mrf.mxu0
        %v952 = vadd.f32 %v768, %v951
        %v953 = vand.u32 %v330, 4294901760
        %v954 = vsub.f32 %v330, %v953
        %955 = vmatmul.f32.gmra.mxu0 %v954
        %v956 = vpop.f32.mrf.mxu0
        %v957 = vadd.f32 %v772, %v956
        %958 = vdwg.mxu0
        %959 = vmatpush.msra.mxu0 0.0
        %960 = vmatpush.msra.mxu0 0.0
        %961 = vmatpush.msra.mxu0 0.0
        %962 = vmatpush.msra.mxu0 0.0
        %963 = vmatpush.msra.mxu0 0.0
        %964 = vmatpush.msra.mxu0 0.0
        %965 = vmatpush.msra.mxu0 0.0
        %966 = vmatpush.msra.mxu0 0.0
        %967 = vmatpush.msra.mxu0 0.0
        %968 = vmatpush.msra.mxu0 0.0
        %969 = vmatpush.msra.mxu0 0.0
        %970 = vmatpush.msra.mxu0 0.0
        %v971 = vand.u32 %v234, 4294901760
        %972 = vmatpush.msra.mxu0 %v971
        %v973 = vand.u32 %v233, 4294901760
        %974 = vmatpush.msra.mxu0 %v973
        %v975 = vand.u32 %v232, 4294901760
        %976 = vmatpush.msra.mxu0 %v975
        %v977 = vand.u32 %v231, 4294901760
        %978 = vmatpush.msra.mxu0 %v977
        %v979 = vand.u32 %v237, 4294901760
        %v980 = vsub.f32 %v237, %v979
        %v981 = vand.u32 %v980, 4294901760
        %982 = vmatmul.f32.gmra.mxu0 %v981
        %v983 = vpop.f32.mrf.mxu0
        %v984 = vadd.f32 %v802, %v983
        %v985 = vand.u32 %v240, 4294901760
        %v986 = vsub.f32 %v240, %v985
        %v987 = vand.u32 %v986, 4294901760
        %988 = vmatmul.f32.gmra.mxu0 %v987
        %v989 = vpop.f32.mrf.mxu0
        %v990 = vadd.f32 %v807, %v989
        %v991 = vand.u32 %v243, 4294901760
        %v992 = vsub.f32 %v243, %v991
        %v993 = vand.u32 %v992, 4294901760
        %994 = vmatmul.f32.gmra.mxu0 %v993
        %v995 = vpop.f32.mrf.mxu0
        %v996 = vadd.f32 %v812, %v995
        %v997 = vand.u32 %v246, 4294901760
        %v998 = vsub.f32 %v246, %v997
        %v999 = vand.u32 %v998, 4294901760
        %1000 = vmatmul.f32.gmra.mxu0 %v999
        %v1001 = vpop.f32.mrf.mxu0
        %v1002 = vadd.f32 %v817, %v1001
        %v1003 = vand.u32 %v249, 4294901760
        %v1004 = vsub.f32 %v249, %v1003
        %v1005 = vand.u32 %v1004, 4294901760
        %1006 = vmatmul.f32.gmra.mxu0 %v1005
        %v1007 = vpop.f32.mrf.mxu0
        %v1008 = vadd.f32 %v822, %v1007
        %v1009 = vand.u32 %v252, 4294901760
        %v1010 = vsub.f32 %v252, %v1009
        %v1011 = vand.u32 %v1010, 4294901760
        %1012 = vmatmul.f32.gmra.mxu0 %v1011
        %v1013 = vpop.f32.mrf.mxu0
        %v1014 = vadd.f32 %v827, %v1013
        %v1015 = vand.u32 %v255, 4294901760
        %v1016 = vsub.f32 %v255, %v1015
        %v1017 = vand.u32 %v1016, 4294901760
        %1018 = vmatmul.f32.gmra.mxu0 %v1017
        %v1019 = vpop.f32.mrf.mxu0
        %v1020 = vadd.f32 %v832, %v1019
        %v1021 = vand.u32 %v258, 4294901760
        %v1022 = vsub.f32 %v258, %v1021
        %v1023 = vand.u32 %v1022, 4294901760
        %1024 = vmatmul.f32.gmra.mxu0 %v1023
        %v1025 = vpop.f32.mrf.mxu0
        %v1026 = vadd.f32 %v837, %v1025
        %v1027 = vand.u32 %v261, 4294901760
        %v1028 = vsub.f32 %v261, %v1027
        %v1029 = vand.u32 %v1028, 4294901760
        %1030 = vmatmul.f32.gmra.mxu0 %v1029
        %v1031 = vpop.f32.mrf.mxu0
        %v1032 = vadd.f32 %v842, %v1031
        %v1033 = vand.u32 %v264, 4294901760
        %v1034 = vsub.f32 %v264, %v1033
        %v1035 = vand.u32 %v1034, 4294901760
        %1036 = vmatmul.f32.gmra.mxu0 %v1035
        %v1037 = vpop.f32.mrf.mxu0
        %v1038 = vadd.f32 %v847, %v1037
        %v1039 = vand.u32 %v267, 4294901760
        %v1040 = vsub.f32 %v267, %v1039
        %v1041 = vand.u32 %v1040, 4294901760
        %1042 = vmatmul.f32.gmra.mxu0 %v1041
        %v1043 = vpop.f32.mrf.mxu0
        %v1044 = vadd.f32 %v852, %v1043
        %v1045 = vand.u32 %v270, 4294901760
        %v1046 = vsub.f32 %v270, %v1045
        %v1047 = vand.u32 %v1046, 4294901760
        %1048 = vmatmul.f32.gmra.mxu0 %v1047
        %v1049 = vpop.f32.mrf.mxu0
        %v1050 = vadd.f32 %v857, %v1049
        %v1051 = vand.u32 %v273, 4294901760
        %v1052 = vsub.f32 %v273, %v1051
        %v1053 = vand.u32 %v1052, 4294901760
        %1054 = vmatmul.f32.gmra.mxu0 %v1053
        %v1055 = vpop.f32.mrf.mxu0
        %v1056 = vadd.f32 %v862, %v1055
        %v1057 = vand.u32 %v276, 4294901760
        %v1058 = vsub.f32 %v276, %v1057
        %v1059 = vand.u32 %v1058, 4294901760
        %1060 = vmatmul.f32.gmra.mxu0 %v1059
        %v1061 = vpop.f32.mrf.mxu0
        %v1062 = vadd.f32 %v867, %v1061
        %v1063 = vand.u32 %v279, 4294901760
        %v1064 = vsub.f32 %v279, %v1063
        %v1065 = vand.u32 %v1064, 4294901760
        %1066 = vmatmul.f32.gmra.mxu0 %v1065
        %v1067 = vpop.f32.mrf.mxu0
        %v1068 = vadd.f32 %v872, %v1067
        %v1069 = vand.u32 %v282, 4294901760
        %v1070 = vsub.f32 %v282, %v1069
        %v1071 = vand.u32 %v1070, 4294901760
        %1072 = vmatmul.f32.gmra.mxu0 %v1071
        %v1073 = vpop.f32.mrf.mxu0
        %v1074 = vadd.f32 %v877, %v1073
        %v1075 = vand.u32 %v285, 4294901760
        %v1076 = vsub.f32 %v285, %v1075
        %v1077 = vand.u32 %v1076, 4294901760
        %1078 = vmatmul.f32.gmra.mxu0 %v1077
        %v1079 = vpop.f32.mrf.mxu0
        %v1080 = vadd.f32 %v882, %v1079
        %v1081 = vand.u32 %v288, 4294901760
        %v1082 = vsub.f32 %v288, %v1081
        %v1083 = vand.u32 %v1082, 4294901760
        %1084 = vmatmul.f32.gmra.mxu0 %v1083
        %v1085 = vpop.f32.mrf.mxu0
        %v1086 = vadd.f32 %v887, %v1085
        %v1087 = vand.u32 %v291, 4294901760
        %v1088 = vsub.f32 %v291, %v1087
        %v1089 = vand.u32 %v1088, 4294901760
        %1090 = vmatmul.f32.gmra.mxu0 %v1089
        %v1091 = vpop.f32.mrf.mxu0
        %v1092 = vadd.f32 %v892, %v1091
        %v1093 = vand.u32 %v294, 4294901760
        %v1094 = vsub.f32 %v294, %v1093
        %v1095 = vand.u32 %v1094, 4294901760
        %1096 = vmatmul.f32.gmra.mxu0 %v1095
        %v1097 = vpop.f32.mrf.mxu0
        %v1098 = vadd.f32 %v897, %v1097
        %v1099 = vand.u32 %v297, 4294901760
        %v1100 = vsub.f32 %v297, %v1099
        %v1101 = vand.u32 %v1100, 4294901760
        %1102 = vmatmul.f32.gmra.mxu0 %v1101
        %v1103 = vpop.f32.mrf.mxu0
        %v1104 = vadd.f32 %v902, %v1103
        %v1105 = vand.u32 %v300, 4294901760
        %v1106 = vsub.f32 %v300, %v1105
        %v1107 = vand.u32 %v1106, 4294901760
        %1108 = vmatmul.f32.gmra.mxu0 %v1107
        %v1109 = vpop.f32.mrf.mxu0
        %v1110 = vadd.f32 %v907, %v1109
        %v1111 = vand.u32 %v303, 4294901760
        %v1112 = vsub.f32 %v303, %v1111
        %v1113 = vand.u32 %v1112, 4294901760
        %1114 = vmatmul.f32.gmra.mxu0 %v1113
        %v1115 = vpop.f32.mrf.mxu0
        %v1116 = vadd.f32 %v912, %v1115
        %v1117 = vand.u32 %v306, 4294901760
        %v1118 = vsub.f32 %v306, %v1117
        %v1119 = vand.u32 %v1118, 4294901760
        %1120 = vmatmul.f32.gmra.mxu0 %v1119
        %v1121 = vpop.f32.mrf.mxu0
        %v1122 = vadd.f32 %v917, %v1121
        %v1123 = vand.u32 %v309, 4294901760
        %v1124 = vsub.f32 %v309, %v1123
        %v1125 = vand.u32 %v1124, 4294901760
        %1126 = vmatmul.f32.gmra.mxu0 %v1125
        %v1127 = vpop.f32.mrf.mxu0
        %v1128 = vadd.f32 %v922, %v1127
        %v1129 = vand.u32 %v312, 4294901760
        %v1130 = vsub.f32 %v312, %v1129
        %v1131 = vand.u32 %v1130, 4294901760
        %1132 = vmatmul.f32.gmra.mxu0 %v1131
        %v1133 = vpop.f32.mrf.mxu0
        %v1134 = vadd.f32 %v927, %v1133
        %v1135 = vand.u32 %v315, 4294901760
        %v1136 = vsub.f32 %v315, %v1135
        %v1137 = vand.u32 %v1136, 4294901760
        %1138 = vmatmul.f32.gmra.mxu0 %v1137
        %v1139 = vpop.f32.mrf.mxu0
        %v1140 = vadd.f32 %v932, %v1139
        %v1141 = vand.u32 %v318, 4294901760
        %v1142 = vsub.f32 %v318, %v1141
        %v1143 = vand.u32 %v1142, 4294901760
        %1144 = vmatmul.f32.gmra.mxu0 %v1143
        %v1145 = vpop.f32.mrf.mxu0
        %v1146 = vadd.f32 %v937, %v1145
        %v1147 = vand.u32 %v321, 4294901760
        %v1148 = vsub.f32 %v321, %v1147
        %v1149 = vand.u32 %v1148, 4294901760
        %1150 = vmatmul.f32.gmra.mxu0 %v1149
        %v1151 = vpop.f32.mrf.mxu0
        %v1152 = vadd.f32 %v942, %v1151
        %v1153 = vand.u32 %v324, 4294901760
        %v1154 = vsub.f32 %v324, %v1153
        %v1155 = vand.u32 %v1154, 4294901760
        %1156 = vmatmul.f32.gmra.mxu0 %v1155
        %v1157 = vpop.f32.mrf.mxu0
        %v1158 = vadd.f32 %v947, %v1157
        %v1159 = vand.u32 %v327, 4294901760
        %v1160 = vsub.f32 %v327, %v1159
        %v1161 = vand.u32 %v1160, 4294901760
        %1162 = vmatmul.f32.gmra.mxu0 %v1161
        %v1163 = vpop.f32.mrf.mxu0
        %v1164 = vadd.f32 %v952, %v1163
        %v1165 = vand.u32 %v330, 4294901760
        %v1166 = vsub.f32 %v330, %v1165
        %v1167 = vand.u32 %v1166, 4294901760
        %1168 = vmatmul.f32.gmra.mxu0 %v1167
        %v1169 = vpop.f32.mrf.mxu0
        %v1170 = vadd.f32 %v957, %v1169
        %1171 = vdwg.mxu0
        %1172 = vmatpush.msra.mxu0 0.0
        %1173 = vmatpush.msra.mxu0 0.0
        %1174 = vmatpush.msra.mxu0 0.0
        %1175 = vmatpush.msra.mxu0 0.0
        %1176 = vmatpush.msra.mxu0 0.0
        %1177 = vmatpush.msra.mxu0 0.0
        %1178 = vmatpush.msra.mxu0 0.0
        %1179 = vmatpush.msra.mxu0 0.0
        %1180 = vmatpush.msra.mxu0 0.0
        %1181 = vmatpush.msra.mxu0 0.0
        %1182 = vmatpush.msra.mxu0 0.0
        %1183 = vmatpush.msra.mxu0 0.0
        %v1184 = vand.u32 %v234, 4294901760
        %v1185 = vsub.f32 %v234, %v1184
        %v1186 = vand.u32 %v1185, 4294901760
        %1187 = vmatpush.msra.mxu0 %v1186
        %v1188 = vand.u32 %v233, 4294901760
        %v1189 = vsub.f32 %v233, %v1188
        %v1190 = vand.u32 %v1189, 4294901760
        %1191 = vmatpush.msra.mxu0 %v1190
        %v1192 = vand.u32 %v232, 4294901760
        %v1193 = vsub.f32 %v232, %v1192
        %v1194 = vand.u32 %v1193, 4294901760
        %1195 = vmatpush.msra.mxu0 %v1194
        %v1196 = vand.u32 %v231, 4294901760
        %v1197 = vsub.f32 %v231, %v1196
        %v1198 = vand.u32 %v1197, 4294901760
        %1199 = vmatpush.msra.mxu0 %v1198
        %v1200 = vand.u32 %v237, 4294901760
        %1201 = vmatmul.f32.gmra.mxu0 %v1200
        %v1202 = vpop.f32.mrf.mxu0
        %v1203 = vadd.f32 %v984, %v1202
        %v1204 = vand.u32 %v240, 4294901760
        %1205 = vmatmul.f32.gmra.mxu0 %v1204
        %v1206 = vpop.f32.mrf.mxu0
        %v1207 = vadd.f32 %v990, %v1206
        %v1208 = vand.u32 %v243, 4294901760
        %1209 = vmatmul.f32.gmra.mxu0 %v1208
        %v1210 = vpop.f32.mrf.mxu0
        %v1211 = vadd.f32 %v996, %v1210
        %v1212 = vand.u32 %v246, 4294901760
        %1213 = vmatmul.f32.gmra.mxu0 %v1212
        %v1214 = vpop.f32.mrf.mxu0
        %v1215 = vadd.f32 %v1002, %v1214
        %v1216 = vand.u32 %v249, 4294901760
        %1217 = vmatmul.f32.gmra.mxu0 %v1216
        %v1218 = vpop.f32.mrf.mxu0
        %v1219 = vadd.f32 %v1008, %v1218
        %v1220 = vand.u32 %v252, 4294901760
        %1221 = vmatmul.f32.gmra.mxu0 %v1220
        %v1222 = vpop.f32.mrf.mxu0
        %v1223 = vadd.f32 %v1014, %v1222
        %v1224 = vand.u32 %v255, 4294901760
        %1225 = vmatmul.f32.gmra.mxu0 %v1224
        %v1226 = vpop.f32.mrf.mxu0
        %v1227 = vadd.f32 %v1020, %v1226
        %v1228 = vand.u32 %v258, 4294901760
        %1229 = vmatmul.f32.gmra.mxu0 %v1228
        %v1230 = vpop.f32.mrf.mxu0
        %v1231 = vadd.f32 %v1026, %v1230
        %v1232 = vand.u32 %v261, 4294901760
        %1233 = vmatmul.f32.gmra.mxu0 %v1232
        %v1234 = vpop.f32.mrf.mxu0
        %v1235 = vadd.f32 %v1032, %v1234
        %v1236 = vand.u32 %v264, 4294901760
        %1237 = vmatmul.f32.gmra.mxu0 %v1236
        %v1238 = vpop.f32.mrf.mxu0
        %v1239 = vadd.f32 %v1038, %v1238
        %v1240 = vand.u32 %v267, 4294901760
        %1241 = vmatmul.f32.gmra.mxu0 %v1240
        %v1242 = vpop.f32.mrf.mxu0
        %v1243 = vadd.f32 %v1044, %v1242
        %v1244 = vand.u32 %v270, 4294901760
        %1245 = vmatmul.f32.gmra.mxu0 %v1244
        %v1246 = vpop.f32.mrf.mxu0
        %v1247 = vadd.f32 %v1050, %v1246
        %v1248 = vand.u32 %v273, 4294901760
        %1249 = vmatmul.f32.gmra.mxu0 %v1248
        %v1250 = vpop.f32.mrf.mxu0
        %v1251 = vadd.f32 %v1056, %v1250
        %v1252 = vand.u32 %v276, 4294901760
        %1253 = vmatmul.f32.gmra.mxu0 %v1252
        %v1254 = vpop.f32.mrf.mxu0
        %v1255 = vadd.f32 %v1062, %v1254
        %v1256 = vand.u32 %v279, 4294901760
        %1257 = vmatmul.f32.gmra.mxu0 %v1256
        %v1258 = vpop.f32.mrf.mxu0
        %v1259 = vadd.f32 %v1068, %v1258
        %v1260 = vand.u32 %v282, 4294901760
        %1261 = vmatmul.f32.gmra.mxu0 %v1260
        %v1262 = vpop.f32.mrf.mxu0
        %v1263 = vadd.f32 %v1074, %v1262
        %v1264 = vand.u32 %v285, 4294901760
        %1265 = vmatmul.f32.gmra.mxu0 %v1264
        %v1266 = vpop.f32.mrf.mxu0
        %v1267 = vadd.f32 %v1080, %v1266
        %v1268 = vand.u32 %v288, 4294901760
        %1269 = vmatmul.f32.gmra.mxu0 %v1268
        %v1270 = vpop.f32.mrf.mxu0
        %v1271 = vadd.f32 %v1086, %v1270
        %v1272 = vand.u32 %v291, 4294901760
        %1273 = vmatmul.f32.gmra.mxu0 %v1272
        %v1274 = vpop.f32.mrf.mxu0
        %v1275 = vadd.f32 %v1092, %v1274
        %v1276 = vand.u32 %v294, 4294901760
        %1277 = vmatmul.f32.gmra.mxu0 %v1276
        %v1278 = vpop.f32.mrf.mxu0
        %v1279 = vadd.f32 %v1098, %v1278
        %v1280 = vand.u32 %v297, 4294901760
        %1281 = vmatmul.f32.gmra.mxu0 %v1280
        %v1282 = vpop.f32.mrf.mxu0
        %v1283 = vadd.f32 %v1104, %v1282
        %v1284 = vand.u32 %v300, 4294901760
        %1285 = vmatmul.f32.gmra.mxu0 %v1284
        %v1286 = vpop.f32.mrf.mxu0
        %v1287 = vadd.f32 %v1110, %v1286
        %v1288 = vand.u32 %v303, 4294901760
        %1289 = vmatmul.f32.gmra.mxu0 %v1288
        %v1290 = vpop.f32.mrf.mxu0
        %v1291 = vadd.f32 %v1116, %v1290
        %v1292 = vand.u32 %v306, 4294901760
        %1293 = vmatmul.f32.gmra.mxu0 %v1292
        %v1294 = vpop.f32.mrf.mxu0
        %v1295 = vadd.f32 %v1122, %v1294
        %v1296 = vand.u32 %v309, 4294901760
        %1297 = vmatmul.f32.gmra.mxu0 %v1296
        %v1298 = vpop.f32.mrf.mxu0
        %v1299 = vadd.f32 %v1128, %v1298
        %v1300 = vand.u32 %v312, 4294901760
        %1301 = vmatmul.f32.gmra.mxu0 %v1300
        %v1302 = vpop.f32.mrf.mxu0
        %v1303 = vadd.f32 %v1134, %v1302
        %v1304 = vand.u32 %v315, 4294901760
        %1305 = vmatmul.f32.gmra.mxu0 %v1304
        %v1306 = vpop.f32.mrf.mxu0
        %v1307 = vadd.f32 %v1140, %v1306
        %v1308 = vand.u32 %v318, 4294901760
        %1309 = vmatmul.f32.gmra.mxu0 %v1308
        %v1310 = vpop.f32.mrf.mxu0
        %v1311 = vadd.f32 %v1146, %v1310
        %v1312 = vand.u32 %v321, 4294901760
        %1313 = vmatmul.f32.gmra.mxu0 %v1312
        %v1314 = vpop.f32.mrf.mxu0
        %v1315 = vadd.f32 %v1152, %v1314
        %v1316 = vand.u32 %v324, 4294901760
        %1317 = vmatmul.f32.gmra.mxu0 %v1316
        %v1318 = vpop.f32.mrf.mxu0
        %v1319 = vadd.f32 %v1158, %v1318
        %v1320 = vand.u32 %v327, 4294901760
        %1321 = vmatmul.f32.gmra.mxu0 %v1320
        %v1322 = vpop.f32.mrf.mxu0
        %v1323 = vadd.f32 %v1164, %v1322
        %v1324 = vand.u32 %v330, 4294901760
        %1325 = vmatmul.f32.gmra.mxu0 %v1324
        %v1326 = vpop.f32.mrf.mxu0
        %v1327 = vadd.f32 %v1170, %v1326
        %1328 = vdwg.mxu0
        %1329 = vmatpush.msra.mxu0 0.0
        %1330 = vmatpush.msra.mxu0 0.0
        %1331 = vmatpush.msra.mxu0 0.0
        %1332 = vmatpush.msra.mxu0 0.0
        %1333 = vmatpush.msra.mxu0 0.0
        %1334 = vmatpush.msra.mxu0 0.0
        %1335 = vmatpush.msra.mxu0 0.0
        %1336 = vmatpush.msra.mxu0 0.0
        %1337 = vmatpush.msra.mxu0 0.0
        %1338 = vmatpush.msra.mxu0 0.0
        %1339 = vmatpush.msra.mxu0 0.0
        %1340 = vmatpush.msra.mxu0 0.0
        %v1341 = vand.u32 %v234, 4294901760
        %1342 = vmatpush.msra.mxu0 %v1341
        %v1343 = vand.u32 %v233, 4294901760
        %1344 = vmatpush.msra.mxu0 %v1343
        %v1345 = vand.u32 %v232, 4294901760
        %1346 = vmatpush.msra.mxu0 %v1345
        %v1347 = vand.u32 %v231, 4294901760
        %1348 = vmatpush.msra.mxu0 %v1347
        %v1349 = vand.u32 %v237, 4294901760
        %1350 = vmatmul.f32.gmra.mxu0 %v1349
        %v1351 = vpop.f32.mrf.mxu0
        %v1352 = vadd.f32 %v1203, %v1351
        %v1353 = vand.u32 %v240, 4294901760
        %1354 = vmatmul.f32.gmra.mxu0 %v1353
        %v1355 = vpop.f32.mrf.mxu0
        %v1356 = vadd.f32 %v1207, %v1355
        %v1357 = vand.u32 %v243, 4294901760
        %1358 = vmatmul.f32.gmra.mxu0 %v1357
        %v1359 = vpop.f32.mrf.mxu0
        %v1360 = vadd.f32 %v1211, %v1359
        %v1361 = vand.u32 %v246, 4294901760
        %1362 = vmatmul.f32.gmra.mxu0 %v1361
        %v1363 = vpop.f32.mrf.mxu0
        %v1364 = vadd.f32 %v1215, %v1363
        %v1365 = vand.u32 %v249, 4294901760
        %1366 = vmatmul.f32.gmra.mxu0 %v1365
        %v1367 = vpop.f32.mrf.mxu0
        %v1368 = vadd.f32 %v1219, %v1367
        %v1369 = vand.u32 %v252, 4294901760
        %1370 = vmatmul.f32.gmra.mxu0 %v1369
        %v1371 = vpop.f32.mrf.mxu0
        %v1372 = vadd.f32 %v1223, %v1371
        %v1373 = vand.u32 %v255, 4294901760
        %1374 = vmatmul.f32.gmra.mxu0 %v1373
        %v1375 = vpop.f32.mrf.mxu0
        %v1376 = vadd.f32 %v1227, %v1375
        %v1377 = vand.u32 %v258, 4294901760
        %1378 = vmatmul.f32.gmra.mxu0 %v1377
        %v1379 = vpop.f32.mrf.mxu0
        %v1380 = vadd.f32 %v1231, %v1379
        %v1381 = vand.u32 %v261, 4294901760
        %1382 = vmatmul.f32.gmra.mxu0 %v1381
        %v1383 = vpop.f32.mrf.mxu0
        %v1384 = vadd.f32 %v1235, %v1383
        %v1385 = vand.u32 %v264, 4294901760
        %1386 = vmatmul.f32.gmra.mxu0 %v1385
        %v1387 = vpop.f32.mrf.mxu0
        %v1388 = vadd.f32 %v1239, %v1387
        %v1389 = vand.u32 %v267, 4294901760
        %1390 = vmatmul.f32.gmra.mxu0 %v1389
        %v1391 = vpop.f32.mrf.mxu0
        %v1392 = vadd.f32 %v1243, %v1391
        %v1393 = vand.u32 %v270, 4294901760
        %1394 = vmatmul.f32.gmra.mxu0 %v1393
        %v1395 = vpop.f32.mrf.mxu0
        %v1396 = vadd.f32 %v1247, %v1395
        %v1397 = vand.u32 %v273, 4294901760
        %1398 = vmatmul.f32.gmra.mxu0 %v1397
        %v1399 = vpop.f32.mrf.mxu0
        %v1400 = vadd.f32 %v1251, %v1399
        %v1401 = vand.u32 %v276, 4294901760
        %1402 = vmatmul.f32.gmra.mxu0 %v1401
        %v1403 = vpop.f32.mrf.mxu0
        %v1404 = vadd.f32 %v1255, %v1403
        %v1405 = vand.u32 %v279, 4294901760
        %1406 = vmatmul.f32.gmra.mxu0 %v1405
        %v1407 = vpop.f32.mrf.mxu0
        %v1408 = vadd.f32 %v1259, %v1407
        %v1409 = vand.u32 %v282, 4294901760
        %1410 = vmatmul.f32.gmra.mxu0 %v1409
        %v1411 = vpop.f32.mrf.mxu0
        %v1412 = vadd.f32 %v1263, %v1411
        %v1413 = vand.u32 %v285, 4294901760
        %1414 = vmatmul.f32.gmra.mxu0 %v1413
        %v1415 = vpop.f32.mrf.mxu0
        %v1416 = vadd.f32 %v1267, %v1415
        %v1417 = vand.u32 %v288, 4294901760
        %1418 = vmatmul.f32.gmra.mxu0 %v1417
        %v1419 = vpop.f32.mrf.mxu0
        %v1420 = vadd.f32 %v1271, %v1419
        %v1421 = vand.u32 %v291, 4294901760
        %1422 = vmatmul.f32.gmra.mxu0 %v1421
        %v1423 = vpop.f32.mrf.mxu0
        %v1424 = vadd.f32 %v1275, %v1423
        %v1425 = vand.u32 %v294, 4294901760
        %1426 = vmatmul.f32.gmra.mxu0 %v1425
        %v1427 = vpop.f32.mrf.mxu0
        %v1428 = vadd.f32 %v1279, %v1427
        %v1429 = vand.u32 %v297, 4294901760
        %1430 = vmatmul.f32.gmra.mxu0 %v1429
        %v1431 = vpop.f32.mrf.mxu0
        %v1432 = vadd.f32 %v1283, %v1431
        %v1433 = vand.u32 %v300, 4294901760
        %1434 = vmatmul.f32.gmra.mxu0 %v1433
        %v1435 = vpop.f32.mrf.mxu0
        %v1436 = vadd.f32 %v1287, %v1435
        %v1437 = vand.u32 %v303, 4294901760
        %1438 = vmatmul.f32.gmra.mxu0 %v1437
        %v1439 = vpop.f32.mrf.mxu0
        %v1440 = vadd.f32 %v1291, %v1439
        %v1441 = vand.u32 %v306, 4294901760
        %1442 = vmatmul.f32.gmra.mxu0 %v1441
        %v1443 = vpop.f32.mrf.mxu0
        %v1444 = vadd.f32 %v1295, %v1443
        %v1445 = vand.u32 %v309, 4294901760
        %1446 = vmatmul.f32.gmra.mxu0 %v1445
        %v1447 = vpop.f32.mrf.mxu0
        %v1448 = vadd.f32 %v1299, %v1447
        %v1449 = vand.u32 %v312, 4294901760
        %1450 = vmatmul.f32.gmra.mxu0 %v1449
        %v1451 = vpop.f32.mrf.mxu0
        %v1452 = vadd.f32 %v1303, %v1451
        %v1453 = vand.u32 %v315, 4294901760
        %1454 = vmatmul.f32.gmra.mxu0 %v1453
        %v1455 = vpop.f32.mrf.mxu0
        %v1456 = vadd.f32 %v1307, %v1455
        %v1457 = vand.u32 %v318, 4294901760
        %1458 = vmatmul.f32.gmra.mxu0 %v1457
        %v1459 = vpop.f32.mrf.mxu0
        %v1460 = vadd.f32 %v1311, %v1459
        %v1461 = vand.u32 %v321, 4294901760
        %1462 = vmatmul.f32.gmra.mxu0 %v1461
        %v1463 = vpop.f32.mrf.mxu0
        %v1464 = vadd.f32 %v1315, %v1463
        %v1465 = vand.u32 %v324, 4294901760
        %1466 = vmatmul.f32.gmra.mxu0 %v1465
        %v1467 = vpop.f32.mrf.mxu0
        %v1468 = vadd.f32 %v1319, %v1467
        %v1469 = vand.u32 %v327, 4294901760
        %1470 = vmatmul.f32.gmra.mxu0 %v1469
        %v1471 = vpop.f32.mrf.mxu0
        %v1472 = vadd.f32 %v1323, %v1471
        %v1473 = vand.u32 %v330, 4294901760
        %1474 = vmatmul.f32.gmra.mxu0 %v1473
        %v1475 = vpop.f32.mrf.mxu0
        %v1476 = vadd.f32 %v1327, %v1475
        %1477 = vdwg.mxu0
        %v1478 = vld [vmem:[%s2] sm:$0x1]
        %v1480 = vperm.slane %v1478, 0
        %v1482 = vmul.f32 %v1352, %v1480
        %v1483 = vmul.f32 %v1356, %v1480
        %v1484 = vmul.f32 %v1360, %v1480
        %v1485 = vmul.f32 %v1364, %v1480
        %v1486 = vmul.f32 %v1368, %v1480
        %v1487 = vmul.f32 %v1372, %v1480
        %v1488 = vmul.f32 %v1376, %v1480
        %v1489 = vmul.f32 %v1380, %v1480
        %v1490 = vmul.f32 %v1384, %v1480
        %v1491 = vmul.f32 %v1388, %v1480
        %v1492 = vmul.f32 %v1392, %v1480
        %v1493 = vmul.f32 %v1396, %v1480
        %v1494 = vmul.f32 %v1400, %v1480
        %v1495 = vmul.f32 %v1404, %v1480
        %v1496 = vmul.f32 %v1408, %v1480
        %v1497 = vmul.f32 %v1412, %v1480
        %v1498 = vmul.f32 %v1416, %v1480
        %v1499 = vmul.f32 %v1420, %v1480
        %v1500 = vmul.f32 %v1424, %v1480
        %v1501 = vmul.f32 %v1428, %v1480
        %v1502 = vmul.f32 %v1432, %v1480
        %v1503 = vmul.f32 %v1436, %v1480
        %v1504 = vmul.f32 %v1440, %v1480
        %v1505 = vmul.f32 %v1444, %v1480
        %v1506 = vmul.f32 %v1448, %v1480
        %v1507 = vmul.f32 %v1452, %v1480
        %v1508 = vmul.f32 %v1456, %v1480
        %v1509 = vmul.f32 %v1460, %v1480
        %v1510 = vmul.f32 %v1464, %v1480
        %v1511 = vmul.f32 %v1468, %v1480
        %v1512 = vmul.f32 %v1472, %v1480
        %v1513 = vmul.f32 %v1476, %v1480
        %v1514 = vld [vmem:[%s3] sm:$0x1]
        %v1516 = vperm.slane %v1514, 0
        %v1518 = vadd.f32 %v1482, %v1516
        %v1519 = vadd.f32 %v1483, %v1516
        %v1520 = vadd.f32 %v1484, %v1516
        %v1521 = vadd.f32 %v1485, %v1516
        %v1522 = vadd.f32 %v1486, %v1516
        %v1523 = vadd.f32 %v1487, %v1516
        %v1524 = vadd.f32 %v1488, %v1516
        %v1525 = vadd.f32 %v1489, %v1516
        %v1526 = vadd.f32 %v1490, %v1516
        %v1527 = vadd.f32 %v1491, %v1516
        %v1528 = vadd.f32 %v1492, %v1516
        %v1529 = vadd.f32 %v1493, %v1516
        %v1530 = vadd.f32 %v1494, %v1516
        %v1531 = vadd.f32 %v1495, %v1516
        %v1532 = vadd.f32 %v1496, %v1516
        %v1533 = vadd.f32 %v1497, %v1516
        %v1534 = vadd.f32 %v1498, %v1516
        %v1535 = vadd.f32 %v1499, %v1516
        %v1536 = vadd.f32 %v1500, %v1516
        %v1537 = vadd.f32 %v1501, %v1516
        %v1538 = vadd.f32 %v1502, %v1516
        %v1539 = vadd.f32 %v1503, %v1516
        %v1540 = vadd.f32 %v1504, %v1516
        %v1541 = vadd.f32 %v1505, %v1516
        %v1542 = vadd.f32 %v1506, %v1516
        %v1543 = vadd.f32 %v1507, %v1516
        %v1544 = vadd.f32 %v1508, %v1516
        %v1545 = vadd.f32 %v1509, %v1516
        %v1546 = vadd.f32 %v1510, %v1516
        %v1547 = vadd.f32 %v1511, %v1516
        %v1548 = vadd.f32 %v1512, %v1516
        %v1549 = vadd.f32 %v1513, %v1516
        %1550 = vst [vmem:[%s191] sm:$0xff] %v1518
        %1551 = vst [vmem:[%s191 + $0x8] sm:$0xff] %v1519
        %1552 = vst [vmem:[%s191 + $0x10] sm:$0xff] %v1520
        %1553 = vst [vmem:[%s191 + $0x18] sm:$0xff] %v1521
        %1554 = vst [vmem:[%s191 + $0x20] sm:$0xff] %v1522
        %1555 = vst [vmem:[%s191 + $0x28] sm:$0xff] %v1523
        %1556 = vst [vmem:[%s191 + $0x30] sm:$0xff] %v1524
        %1557 = vst [vmem:[%s191 + $0x38] sm:$0xff] %v1525
        %1558 = vst [vmem:[%s191 + $0x40] sm:$0xff] %v1526
        %1559 = vst [vmem:[%s191 + $0x48] sm:$0xff] %v1527
        %1560 = vst [vmem:[%s191 + $0x50] sm:$0xff] %v1528
        %1561 = vst [vmem:[%s191 + $0x58] sm:$0xff] %v1529
        %1562 = vst [vmem:[%s191 + $0x60] sm:$0xff] %v1530
        %1563 = vst [vmem:[%s191 + $0x68] sm:$0xff] %v1531
        %1564 = vst [vmem:[%s191 + $0x70] sm:$0xff] %v1532
        %1565 = vst [vmem:[%s191 + $0x78] sm:$0xff] %v1533
        %1566 = vst [vmem:[%s191 + $0x80] sm:$0xff] %v1534
        %1567 = vst [vmem:[%s191 + $0x88] sm:$0xff] %v1535
        %1568 = vst [vmem:[%s191 + $0x90] sm:$0xff] %v1536
        %1569 = vst [vmem:[%s191 + $0x98] sm:$0xff] %v1537
        %1570 = vst [vmem:[%s191 + $0xa0] sm:$0xff] %v1538
        %1571 = vst [vmem:[%s191 + $0xa8] sm:$0xff] %v1539
        %1572 = vst [vmem:[%s191 + $0xb0] sm:$0xff] %v1540
        %1573 = vst [vmem:[%s191 + $0xb8] sm:$0xff] %v1541
        %1574 = vst [vmem:[%s191 + $0xc0] sm:$0xff] %v1542
        %1575 = vst [vmem:[%s191 + $0xc8] sm:$0xff] %v1543
        %1576 = vst [vmem:[%s191 + $0xd0] sm:$0xff] %v1544
        %1577 = vst [vmem:[%s191 + $0xd8] sm:$0xff] %v1545
        %1578 = vst [vmem:[%s191 + $0xe0] sm:$0xff] %v1546
        %1579 = vst [vmem:[%s191 + $0xe8] sm:$0xff] %v1547
        %1580 = vst [vmem:[%s191 + $0xf0] sm:$0xff] %v1548
        %1581 = vst [vmem:[%s191 + $0xf8] sm:$0xff] %v1549
        %s1582 = sand.u32 %s115, 1
        %s1583 = scalar_lea.sflag [#allocation3], %s1582
        %s1584 = sand.u32 %s115, 1
        %s1585 = smul.addr %s1584, 256
        %s1586 = scalar_lea.vmem [#allocation2], %s1585
        // Predicated region
        $region37: #{tpu_custom_call.1} parent=35 // pred_check
          %p1587 = pneg %p125
        $region38: #{tpu_custom_call.1} parent=35 // pred_check_branch
          %1589 = sbr.rel (%p1587) target = $region40
        $region39: #{tpu_custom_call.1} parent=35 // pred_region
          %s1590 = smul.u32 32, %s18
          %1592 = vsyncadd %s1583, 0
          %s1593 = smul.addr %s1590, 8
          %s1594 = scalar_lea.hbm %s4, %s1593
          %s1595 = sshll.u32 %s1586, 4
          %s1596 = int_to_ptr.vmem [resolvable:$true] %s1595
          %s1597 = sshll.u32 %s1594, 4
          %s1598 = int_to_ptr.hbm [resolvable:$true] %s1597
          %1603 = dma.vmem_to_hbm [thread:$0]  %s1596, 4096, %s1598, %s1583, 128, 128, 8
        $region40: #{tpu_custom_call.1} parent=35 // pred_fallthru
          _
      $region36: #{tpu_custom_call.1} parent=5 // pred_fallthru
        _
      %p1604 = scmp.le.s32.totalorder 2, %s13
      // Predicated region
      $region41: #{tpu_custom_call.1} parent=5 // pred_check
        %p1605 = pneg %p1604
      $region42: #{tpu_custom_call.1} parent=5 // pred_check_branch
        %1607 = sbr.rel (%p1605) target = $region44
      $region43: #{tpu_custom_call.1} parent=5 // pred_region
        %s1608 = ssub.s32 %s13, 2
        // Predicated region
        $region45: #{tpu_custom_call.1} parent=43 // pred_check
          %p1609 = pneg %p131
        $region46: #{tpu_custom_call.1} parent=43 // pred_check_branch
          %1611 = sbr.rel (%p1609) target = $region48
        $region47: #{tpu_custom_call.1} parent=43 // pred_region
          %s1612 = sand.u32 %s116, 1
          %s1613 = scalar_lea.sflag [#allocation3], %s1612
          %s1614 = sand.u32 %s116, 1
          %s1615 = smul.addr %s1614, 256
          %s1616 = scalar_lea.vmem [#allocation2], %s1615
          %1618 = dma.done %s1613, 4096
        $region48: #{tpu_custom_call.1} parent=43 // pred_fallthru
          _
      $region44: #{tpu_custom_call.1} parent=5 // pred_fallthru
        _
    $region6: #{tpu_custom_call.1} parent=1 // loop_footer
      %s17 = sadd.s32 1, %s13
    $region7: #{tpu_custom_call.1} parent=1 // loop_footer_branch
      %12 = sbr.rel target = $region3
    $region8: #{tpu_custom_call.1} parent=1 // loop_exit
      _
    %1619 = vsyncpa [#allocation3], 1
    %s1620 = scalar_lea.sflag [#allocation3], 1
    %1621 = vsyncpa %s1620, 1

</llo_original>
